<compile_context>
chip_gen: v6e
topology: v6e:2x2x1
jax: 0.10.0
libtpu: 0.0.40
codegen_flags: <defaults>
</compile_context>

<pallas_src>
import functools
import math

import jax
import jax.numpy as jnp
from jax.experimental import pallas as pl
from jax.experimental.pallas import tpu as pltpu


_GELU_C = math.sqrt(2.0 / math.pi)
_NEG_BIG = -1e30          # finite "minus infinity" for the additive causal bias
_LN_EPS = 1e-6            # matches the module's custom LayerNorm (eps = 1e-06)
# Explicit scoped-VMEM budget: > 32 MiB v6e/v7x default, < v7x 64 MiB physical,
# well under v5e/v6e 128 MiB physical. Re-derive tiles against this budget.
_VMEM_LIMIT = 48 * 1024 * 1024


def _layernorm(v, gamma, shift):
    mean = jnp.mean(v, axis=-1, keepdims=True)
    var = jnp.mean((v - mean) ** 2, axis=-1, keepdims=True)       # unbiased=False
    return gamma * ((v - mean) * jax.lax.rsqrt(var + _LN_EPS)) + shift


def _gelu(v):
    return 0.5 * v * (1.0 + jnp.tanh(_GELU_C * (v + 0.044715 * v * v * v)))


def _pick_tile(total, cap):
    """Largest multiple of 128 that divides `total` and is <= cap (or `total`)."""
    cap = min(cap, total)
    t = cap - cap % 128
    while t >= 128:
        if total % t == 0:
            return t
        t -= 128
    return total


# ---------------------------------------------------------------------------
# Kernel 1: LayerNorm1 + fused QKV projection, streamed over QKV column tiles.
# grid = (B, T // tq, 3D // tnq), all "parallel".
# ---------------------------------------------------------------------------
def ln_qkv_kernel(x_ref, g1_ref, s1_ref, wqkv_ref, qkv_ref, *, mxu_dtype):
    x = x_ref[0]                                                  # (tq, D) f32
    # LN is recomputed per column tile: trivially cheap vs the matmul, and it
    # keeps every grid axis cleanly "parallel" (megacore-safe, no carried state).
    h = _layernorm(x, g1_ref[...], s1_ref[...])
    qkv_ref[0] = jnp.dot(h.astype(mxu_dtype), wqkv_ref[...],
                         preferred_element_type=jnp.float32).astype(qkv_ref.dtype)


# ---------------------------------------------------------------------------
# Kernel 2: causal flash attention + fused out-projection.
# grid = (B, T // tq, H, T // tk); heads and KV tiles are reduction axes that
# carry (m, l, acc) and the per-query-tile out-proj accumulator.
# The 1/sqrt(d_head) scale is already folded into W_q.
# ---------------------------------------------------------------------------
def flash_attn_outproj_kernel(q_ref, k_ref, v_ref, wo_ref, bo_ref, o_ref,
                              m_sc, l_sc, acc_sc, ctx_sc,
                              *, tq, tk, mxu_dtype, ew_dtype, recip_approx):
    qi = pl.program_id(1)
    hd = pl.program_id(2)
    ki = pl.program_id(3)
    n_heads = pl.num_programs(2)
    n_kv = pl.num_programs(3)

    @pl.when(ki == 0)
    def _init_head():
        m_sc[...] = jnp.full_like(m_sc, _NEG_BIG)
        l_sc[...] = jnp.zeros_like(l_sc)
        acc_sc[...] = jnp.zeros_like(acc_sc)

    @pl.when((ki == 0) & (hd == 0))
    def _init_out():
        ctx_sc[...] = jnp.zeros_like(ctx_sc)

    # Tile intersects the causal region iff its first column <= last query row.
    compute = ki * tk <= qi * tq + (tq - 1)
    # Tile needs no mask iff its last column <= first query row.
    interior = ki * tk + (tk - 1) <= qi * tq

    @pl.when(compute)
    def _update():
        q = q_ref[0]                                              # (tq, dh)
        k = k_ref[0]                                              # (tk, dh)
        v = v_ref[0]                                              # (tk, dh)
        s = jax.lax.dot_general(q, k, (((1,), (1,)), ((), ())),
                                preferred_element_type=jnp.float32)   # q @ k.T

        def online_update(scores):
            m_prev = m_sc[...]
            m_new = jnp.maximum(m_prev, jnp.max(scores, axis=-1, keepdims=True))
            alpha = jnp.exp(m_prev - m_new)
            # exp in ew_dtype (bf16 on v6e/v7x => ~2x EUP rate); sum back in f32.
            p = jnp.exp((scores - m_new).astype(ew_dtype))
            l_sc[...] = alpha * l_sc[...] + jnp.sum(
                p.astype(jnp.float32), axis=-1, keepdims=True)
            acc_sc[...] = alpha * acc_sc[...] + jax.lax.dot_general(
                p.astype(v.dtype), v, (((1,), (0,)), ((), ())),
                preferred_element_type=jnp.float32)
            m_sc[...] = m_new

        @pl.when(interior)
        def _no_mask():                                           # fast path
            online_update(s)

        @pl.when(jnp.logical_not(interior))
        def _masked():                                            # diagonal tiles
            row = qi * tq + jax.lax.broadcasted_iota(jnp.int32, (tq, tk), 0)
            col = ki * tk + jax.lax.broadcasted_iota(jnp.int32, (tq, tk), 1)
            online_update(s + jnp.where(col <= row, 0.0, _NEG_BIG))

    @pl.when(ki == n_kv - 1)
    def _head_epilogue():
        # ki == 0 always intersects the causal region, so l >= 1 per row here.
        inv_l = pl.reciprocal(l_sc[...], approx=recip_approx)
        ctx_h = (acc_sc[...] * inv_l).astype(mxu_dtype)           # (tq, dh)
        # Fused out-projection: attn = sum_h ctx_h @ wo[h*dh:(h+1)*dh, :]
        ctx_sc[...] += jnp.dot(ctx_h, wo_ref[...],
                               preferred_element_type=jnp.float32)

    @pl.when((ki == n_kv - 1) & (hd == n_heads - 1))
    def _write():
        o_ref[0] = (ctx_sc[...] + bo_ref[...]).astype(o_ref.dtype)


# ---------------------------------------------------------------------------
# Kernel 3: residual + LayerNorm2 + GeLU MLP (+ residual) over flattened rows.
# grid = (B*T // tr, hidden // th); the hidden axis streams w1/w2 tiles and
# accumulates the second matmul ("arbitrary" reduction axis).
# ---------------------------------------------------------------------------
def mlp_kernel(x_ref, attn_ref, g2_ref, s2_ref, w1_ref, b1_ref, w2_ref, b2_ref,
               o_ref, x1_sc, h2_sc, acc_sc, *, mxu_dtype, ew_dtype):
    j = pl.program_id(1)

    @pl.when(j == 0)
    def _init():
        x1 = x_ref[...] + attn_ref[...]                           # residual #1
        x1_sc[...] = x1
        h2_sc[...] = _layernorm(x1, g2_ref[...], s2_ref[...]).astype(h2_sc.dtype)
        acc_sc[...] = jnp.zeros_like(acc_sc)

    # One hidden tile of the MLP: gelu(h2 @ w1_j + b1_j) @ w2_j (accumulated).
    hid = jnp.dot(h2_sc[...], w1_ref[...],
                  preferred_element_type=jnp.float32) + b1_ref[...]
    hid = _gelu(hid.astype(ew_dtype))                             # bf16 on v6e/v7x
    acc_sc[...] += jnp.dot(hid.astype(mxu_dtype), w2_ref[...],
                           preferred_element_type=jnp.float32)

    @pl.when(j == pl.num_programs(1) - 1)
    def _finalize():
        o_ref[...] = (x1_sc[...] + acc_sc[...] + b2_ref[...]).astype(o_ref.dtype)


# ---------------------------------------------------------------------------
# Wrapper
# ---------------------------------------------------------------------------
def transformer_block(x, params, n_heads, *,
                      tq=256, tk=256, qkv_col_tile=1536, th=512, mlp_rows=512,
                      mxu_dtype=jnp.bfloat16, ew_dtype=None,
                      vmem_limit_bytes=_VMEM_LIMIT):
    """mxu_dtype: matmul-input dtype (bf16 default on all TPU generations, f32 acc).
    ew_dtype: dtype for exp/gelu elementwise math; defaults to mxu_dtype
    (use jnp.float32 on v5e, which has no bf16 VPU/EUP)."""
    B, T, D = x.shape
    H = n_heads
    assert D % H == 0
    dh = D // H
    hidden = params["w1"].shape[1]
    assert D % 128 == 0 and dh % 128 == 0, \
        "model dim and head dim must be lane-aligned (multiples of 128)"

    if ew_dtype is None:
        ew_dtype = mxu_dtype
    recip_approx = jnp.dtype(mxu_dtype) != jnp.dtype(jnp.float32)

    tq = _pick_tile(T, tq)
    tk = _pick_tile(T, tk)
    tnq = _pick_tile(3 * D, qkv_col_tile)
    th = _pick_tile(hidden, th)
    N = B * T
    tr = _pick_tile(N, mlp_rows)
    assert tq % 8 == 0 and tk % 8 == 0 and tr % 8 == 0
    nTq, nTk = T // tq, T // tk
    nQ = (3 * D) // tnq
    nHid = hidden // th

    f32 = jnp.float32
    # Fold the 1/sqrt(d_head) attention scale into W_q (zero runtime cost) and
    # fuse the Q/K/V weights into a single (D, 3D) matrix (streamed in column
    # tiles by kernel 1).
    scale = 1.0 / math.sqrt(dh)
    wqkv = jnp.concatenate(
        [params["wq"].astype(f32) * scale, params["wk"].astype(f32),
         params["wv"].astype(f32)], axis=1).astype(mxu_dtype)
    wo = params["wo"].astype(mxu_dtype)
    w1 = params["w1"].astype(mxu_dtype)
    w2 = params["w2"].astype(mxu_dtype)
    bo, b1, b2 = params["bo"], params["b1"], params["b2"]
    g1, s1, g2, s2 = params["g1"], params["s1"], params["g2"], params["s2"]

    # --- kernel 1: LN1 + fused QKV (column-streamed) -----------------------
    qkv = pl.pallas_call(
        functools.partial(ln_qkv_kernel, mxu_dtype=mxu_dtype),
        out_shape=jax.ShapeDtypeStruct((B, T, 3 * D), mxu_dtype),
        grid=(B, nTq, nQ),
        in_specs=[
            pl.BlockSpec((1, tq, D), lambda b, i, j: (b, i, 0)),
            pl.BlockSpec((1, D), lambda b, i, j: (0, 0)),
            pl.BlockSpec((1, D), lambda b, i, j: (0, 0)),
            pl.BlockSpec((D, tnq), lambda b, i, j: (0, j)),        # streamed wqkv
        ],
        out_specs=pl.BlockSpec((1, tq, tnq), lambda b, i, j: (b, i, j)),
        compiler_params=pltpu.CompilerParams(
            dimension_semantics=("parallel", "parallel", "parallel"),
            vmem_limit_bytes=vmem_limit_bytes),
    )(x, g1, s1, wqkv)

    # --- kernel 2: flash attention + fused out-projection ------------------
    # Q/K/V are 128-aligned column slices of the fused qkv array, selected
    # purely through the BlockSpec index_maps. The K/V kv-block index is
    # clamped to the last tile that can intersect the causal diagonal, so
    # fully-masked tiles revisit the previous block and their DMA is elided.
    attn = pl.pallas_call(
        functools.partial(flash_attn_outproj_kernel, tq=tq, tk=tk,
                          mxu_dtype=mxu_dtype, ew_dtype=ew_dtype,
                          recip_approx=recip_approx),
        out_shape=jax.ShapeDtypeStruct((B, T, D), jnp.float32),
        grid=(B, nTq, H, nTk),
        in_specs=[
            pl.BlockSpec((1, tq, dh), lambda b, qi, h, ki: (b, qi, h)),         # Q
            pl.BlockSpec((1, tk, dh),                                           # K
                         lambda b, qi, h, ki:
                         (b, jnp.minimum(ki, (qi * tq + tq - 1) // tk), H + h)),
            pl.BlockSpec((1, tk, dh),                                           # V
                         lambda b, qi, h, ki:
                         (b, jnp.minimum(ki, (qi * tq + tq - 1) // tk), 2 * H + h)),
            pl.BlockSpec((dh, D), lambda b, qi, h, ki: (h, 0)),    # streamed wo rows
            pl.BlockSpec((1, D), lambda b, qi, h, ki: (0, 0)),     # bo
        ],
        out_specs=pl.BlockSpec((1, tq, D), lambda b, qi, h, ki: (b, qi, 0)),
        scratch_shapes=[
            pltpu.VMEM((tq, 1), jnp.float32),     # running max m
            pltpu.VMEM((tq, 1), jnp.float32),     # running sum l
            pltpu.VMEM((tq, dh), jnp.float32),    # per-head output accumulator
            pltpu.VMEM((tq, D), jnp.float32),     # out-proj accumulator (ctx @ wo)
        ],
        compiler_params=pltpu.CompilerParams(
            dimension_semantics=("parallel", "parallel", "arbitrary", "arbitrary"),
            vmem_limit_bytes=vmem_limit_bytes),
    )(qkv, qkv, qkv, wo, bo)

    # --- kernel 3: residual + LN2 + MLP over flattened B*T rows ------------
    x2 = x.reshape(N, D)
    attn2 = attn.reshape(N, D)
    out2 = pl.pallas_call(
        functools.partial(mlp_kernel, mxu_dtype=mxu_dtype, ew_dtype=ew_dtype),
        out_shape=jax.ShapeDtypeStruct((N, D), x.dtype),
        grid=(N // tr, nHid),
        in_specs=[
            pl.BlockSpec((tr, D), lambda i, j: (i, 0)),            # x rows
            pl.BlockSpec((tr, D), lambda i, j: (i, 0)),            # attn rows
            pl.BlockSpec((1, D), lambda i, j: (0, 0)),             # g2
            pl.BlockSpec((1, D), lambda i, j: (0, 0)),             # s2
            pl.BlockSpec((D, th), lambda i, j: (0, j)),            # w1 tile
            pl.BlockSpec((1, th), lambda i, j: (0, j)),            # b1 tile
            pl.BlockSpec((th, D), lambda i, j: (j, 0)),            # w2 tile
            pl.BlockSpec((1, D), lambda i, j: (0, 0)),             # b2
        ],
        out_specs=pl.BlockSpec((tr, D), lambda i, j: (i, 0)),
        scratch_shapes=[
            pltpu.VMEM((tr, D), jnp.float32),     # x1 (residual carry)
            pltpu.VMEM((tr, D), mxu_dtype),       # h2 (LN2 output, matmul input)
            pltpu.VMEM((tr, D), jnp.float32),     # ff accumulator
        ],
        compiler_params=pltpu.CompilerParams(
            dimension_semantics=("parallel", "arbitrary"),
            vmem_limit_bytes=vmem_limit_bytes),
    )(x2, attn2, g2, s2, w1, b1, w2, b2)

    return out2.reshape(B, T, D)


# ---------------------------------------------------------------------------
# Pure-JAX reference (mirrors the PyTorch forward in eval mode).
# ---------------------------------------------------------------------------
def reference_block(x, p, n_heads):
    def ln(v, g, s):
        mean = v.mean(-1, keepdims=True)
        var = ((v - mean) ** 2).mean(-1, keepdims=True)
        return g * ((v - mean) / jnp.sqrt(var + _LN_EPS)) + s

    B, T, D = x.shape
    dh = D // n_heads
    h1 = ln(x, p["g1"], p["s1"])
    q = (h1 @ p["wq"]).reshape(B, T, n_heads, dh).transpose(0, 2, 1, 3)
    k = (h1 @ p["wk"]).reshape(B, T, n_heads, dh).transpose(0, 2, 1, 3)
    v = (h1 @ p["wv"]).reshape(B, T, n_heads, dh).transpose(0, 2, 1, 3)
    s = jnp.einsum("bhtd,bhsd->bhts", q, k)
    mask = jnp.triu(jnp.ones((T, T), bool), 1)
    s = jnp.where(mask, -jnp.inf, s) / jnp.sqrt(dh)
    w = jax.nn.softmax(s, axis=-1)
    ctx = jnp.einsum("bhts,bhsd->bhtd", w, v).transpose(0, 2, 1, 3).reshape(B, T, D)
    attn = ctx @ p["wo"] + p["bo"]
    x1 = x + attn
    h2 = ln(x1, p["g2"], p["s2"])
    ff = _gelu(h2 @ p["w1"] + p["b1"]) @ p["w2"] + p["b2"]
    return x1 + ff


if __name__ == "__main__":
    # Small but lane-friendly shapes: d_head = 128, hidden = 4*D = 1024.
    # (Tuning decisions should be re-validated at production shapes — at this
    #  scale per-grid-step overhead dominates.)
    B, T, D, H = 2, 256, 256, 2
    key = jax.random.PRNGKey(0)
    ks = jax.random.split(key, 10)

    params = {
        "wq": jax.random.normal(ks[0], (D, D), jnp.float32) * 0.05,
        "wk": jax.random.normal(ks[1], (D, D), jnp.float32) * 0.05,
        "wv": jax.random.normal(ks[2], (D, D), jnp.float32) * 0.05,
        "wo": jax.random.normal(ks[3], (D, D), jnp.float32) * 0.05,
        "bo": jax.random.normal(ks[4], (1, D), jnp.float32) * 0.01,
        "w1": jax.random.normal(ks[5], (D, 4 * D), jnp.float32) * 0.05,
        "b1": jax.random.normal(ks[6], (1, 4 * D), jnp.float32) * 0.01,
        "w2": jax.random.normal(ks[7], (4 * D, D), jnp.float32) * 0.05,
        "b2": jax.random.normal(ks[8], (1, D), jnp.float32) * 0.01,
        "g1": jnp.ones((1, D), jnp.float32),
        "s1": jnp.zeros((1, D), jnp.float32),
        "g2": jnp.ones((1, D), jnp.float32),
        "s2": jnp.zeros((1, D), jnp.float32),
    }
    x = jax.random.normal(ks[9], (B, T, D), jnp.float32)

    ref = reference_block(x, params, n_heads=H)

    # f32 MXU inputs + f32 elementwise + exact reciprocal: numerically tight.
    out_f32 = jax.block_until_ready(
        transformer_block(x, params, n_heads=H, mxu_dtype=jnp.float32))
    assert out_f32.shape == (B, T, D)
    err_f32 = float(jnp.max(jnp.abs(out_f32 - ref)))
    assert err_f32 < 1e-2, f"f32 kernel mismatch vs reference: {err_f32}"

    # bf16 MXU inputs, bf16 exp/gelu, f32 accumulation: the default fast path
    # (preferred on v5e, v6e and v7x; on v5e pass ew_dtype=jnp.float32).
    out_bf16 = jax.block_until_ready(
        transformer_block(x, params, n_heads=H, mxu_dtype=jnp.bfloat16))
    rel = float(jnp.sqrt(jnp.mean((out_bf16 - ref) ** 2) / jnp.mean(ref ** 2)))
    assert rel < 3e-2, f"bf16 kernel relative error too large: {rel}"

    print("KERNEL_OK")
</pallas_src>

<mosaic_0001>
module attributes {stable_mosaic.version = 11 : i64} {
  func.func @ln_qkv_kernel(%arg0: i32, %arg1: i32, %arg2: i32, %arg3: memref<1x256x256xf32, #tpu.memory_space<vmem>>, %arg4: memref<1x256xf32, #tpu.memory_space<vmem>>, %arg5: memref<1x256xf32, #tpu.memory_space<vmem>>, %arg6: memref<256x768xf32, #tpu.memory_space<vmem>>, %arg7: memref<1x256x768xf32, #tpu.memory_space<vmem>>) attributes {dimension_semantics = [#tpu.dimension_semantics<parallel>, #tpu.dimension_semantics<parallel>, #tpu.dimension_semantics<parallel>], iteration_bounds = array<i64: 2, 1, 1>, scalar_prefetch = 0 : i64, scratch_operands = 0 : i64, tpu.core_type = #tpu.core_type<tc>, window_params = [{transform_indices = @transform_0, window_bounds = array<i64: 1, 256, 256>}, {pipeline_mode = #tpu.pipeline_mode<synchronous>, transform_indices = @transform_1, window_bounds = array<i64: 1, 256>}, {pipeline_mode = #tpu.pipeline_mode<synchronous>, transform_indices = @transform_2, window_bounds = array<i64: 1, 256>}, {transform_indices = @transform_3, window_bounds = array<i64: 256, 768>}, {transform_indices = @transform_4, window_bounds = array<i64: 1, 256, 768>}]} {
    %c0 = arith.constant 0 : index
    %c0_0 = arith.constant 0 : index
    %c0_1 = arith.constant 0 : index
    %0 = vector.load %arg3[%c0, %c0_0, %c0_1] : memref<1x256x256xf32, #tpu.memory_space<vmem>>, vector<1x256x256xf32>
    %1 = vector.shape_cast %0 : vector<1x256x256xf32> to vector<256x256xf32>
    %c0_2 = arith.constant 0 : index
    %c0_3 = arith.constant 0 : index
    %2 = vector.load %arg4[%c0_2, %c0_3] : memref<1x256xf32, #tpu.memory_space<vmem>>, vector<1x256xf32>
    %c0_4 = arith.constant 0 : index
    %c0_5 = arith.constant 0 : index
    %3 = vector.load %arg5[%c0_4, %c0_5] : memref<1x256xf32, #tpu.memory_space<vmem>>, vector<1x256xf32>
    %cst = arith.constant dense<0.000000e+00> : vector<256xf32>
    %4 = vector.multi_reduction <add>, %1, %cst [1] : vector<256x256xf32> to vector<256xf32>
    %5 = vector.shape_cast %4 : vector<256xf32> to vector<256x1xf32>
    %cst_6 = arith.constant 2.560000e+02 : f32
    %6 = vector.broadcast %cst_6 : f32 to vector<256x1xf32>
    %7 = arith.divf %5, %6 : vector<256x1xf32>
    %8 = vector.broadcast %7 : vector<256x1xf32> to vector<256x256xf32>
    %9 = arith.subf %1, %8 : vector<256x256xf32>
    %10 = arith.mulf %9, %9 : vector<256x256xf32>
    %cst_7 = arith.constant dense<0.000000e+00> : vector<256xf32>
    %11 = vector.multi_reduction <add>, %10, %cst_7 [1] : vector<256x256xf32> to vector<256xf32>
    %12 = vector.shape_cast %11 : vector<256xf32> to vector<256x1xf32>
    %cst_8 = arith.constant 2.560000e+02 : f32
    %13 = vector.broadcast %cst_8 : f32 to vector<256x1xf32>
    %14 = arith.divf %12, %13 : vector<256x1xf32>
    %15 = vector.broadcast %7 : vector<256x1xf32> to vector<256x256xf32>
    %16 = arith.subf %1, %15 : vector<256x256xf32>
    %cst_9 = arith.constant 9.99999997E-7 : f32
    %17 = vector.broadcast %cst_9 : f32 to vector<256x1xf32>
    %18 = arith.addf %14, %17 : vector<256x1xf32>
    %19 = math.rsqrt %18 : vector<256x1xf32>
    %20 = vector.broadcast %19 : vector<256x1xf32> to vector<256x256xf32>
    %21 = arith.mulf %16, %20 : vector<256x256xf32>
    %22 = vector.broadcast %2 : vector<1x256xf32> to vector<256x256xf32>
    %23 = arith.mulf %22, %21 : vector<256x256xf32>
    %24 = vector.broadcast %3 : vector<1x256xf32> to vector<256x256xf32>
    %25 = arith.addf %23, %24 : vector<256x256xf32>
    %c0_10 = arith.constant 0 : index
    %c0_11 = arith.constant 0 : index
    %26 = vector.load %arg6[%c0_10, %c0_11] : memref<256x768xf32, #tpu.memory_space<vmem>>, vector<256x768xf32>
    %cst_12 = arith.constant dense<0.000000e+00> : vector<256x768xf32>
    %27 = tpu.matmul %25, %26, %cst_12 {dimension_numbers = #tpu.dot_dimension_numbers<[1], [0], [0], [1], [0, 0, 1, 1], [], []>} : vector<256x256xf32>, vector<256x768xf32>, vector<256x768xf32> -> vector<256x768xf32>
    %c0_13 = arith.constant 0 : index
    %c0_14 = arith.constant 0 : index
    %c0_15 = arith.constant 0 : index
    %28 = vector.load %arg7[%c0_13, %c0_14, %c0_15] : memref<1x256x768xf32, #tpu.memory_space<vmem>>, vector<1x256x768xf32>
    %29 = vector.shape_cast %28 : vector<1x256x768xf32> to vector<256x768xf32>
    %30 = vector.shape_cast %27 : vector<256x768xf32> to vector<1x256x768xf32>
    tpu.vector_store %arg7[%c0_13, %c0_14, %c0_15], %30 {strides = array<i32>} : memref<1x256x768xf32, #tpu.memory_space<vmem>>, vector<1x256x768xf32>,
    return
  }
  func.func @transform_0(%arg0: i32, %arg1: i32, %arg2: i32) -> (i32, i32, i32) {
    %c0_i32 = arith.constant 0 : i32
    %c0_i32_0 = arith.constant 0 : i32
    return %arg0, %arg1, %c0_i32 : i32, i32, i32
  }
  func.func @transform_1(%arg0: i32, %arg1: i32, %arg2: i32) -> (i32, i32) {
    %c0_i32 = arith.constant 0 : i32
    %c0_i32_0 = arith.constant 0 : i32
    %c0_i32_1 = arith.constant 0 : i32
    return %c0_i32, %c0_i32_0 : i32, i32
  }
  func.func @transform_2(%arg0: i32, %arg1: i32, %arg2: i32) -> (i32, i32) {
    %c0_i32 = arith.constant 0 : i32
    %c0_i32_0 = arith.constant 0 : i32
    %c0_i32_1 = arith.constant 0 : i32
    return %c0_i32, %c0_i32_0 : i32, i32
  }
  func.func @transform_3(%arg0: i32, %arg1: i32, %arg2: i32) -> (i32, i32) {
    %c0_i32 = arith.constant 0 : i32
    %c0_i32_0 = arith.constant 0 : i32
    return %c0_i32, %arg2 : i32, i32
  }
  func.func @transform_4(%arg0: i32, %arg1: i32, %arg2: i32) -> (i32, i32, i32) {
    %c0_i32 = arith.constant 0 : i32
    return %arg0, %arg1, %arg2 : i32, i32, i32
  }
}

</mosaic_0001>

<llo_original>
// kernel: tpu_custom_call.1
$region0: #{tpu_custom_call.1}
  #allocation0 [shape = 'u32[]', space=smem, size = 0x4, offset = 0x4, fixed_abs, tag = 'smem constant byte address 0x4 - core index']
  #allocation1 [shape = 'u32[144,128]{1,0:T(1,128)}', space=vmem, size = 0x12000, scoped, tag = 'internal scratch']
  %s0 = inlined_call_operand.hbm [shape: f32[2,256,256], index: 0, kind: input, shape index: {}]
  %s1 = inlined_call_operand.hbm [shape: f32[1,256], index: 1, kind: input, shape index: {}]
  %s2 = inlined_call_operand.hbm [shape: f32[1,256], index: 2, kind: input, shape index: {}]
  %s3 = inlined_call_operand.hbm [shape: f32[256,768], index: 3, kind: input, shape index: {}]
  %s4 = inlined_call_operand.hbm [shape: f32[2,256,768], index: 4, kind: output, shape index: {}]
  %s5 = sld [smem:[#allocation0]]
  $region65: #{tpu_custom_call.1} parent=0
    _
  %s7 = ssub.s32 1, %s5
  %s8 = scalar_select 0, %s7, %s5
  $region1: #{tpu_custom_call.1} parent=0
    #allocation2 [shape = 'u8[524288]{0}', space=vmem, size = 0x80000, scoped, tag = 'input window, operand 0']
    #allocation3 [shape = 's32[2]{0}', space=sflag, size = 0x8, scoped, tag = 'scoped memory for tpu_custom_call.1']
    #allocation4 [shape = 's32[2]{0}', space=sflag, size = 0x8, scoped, tag = 'scoped memory for tpu_custom_call.1']
    #allocation5 [shape = 'u8[1024]{0}', space=vmem, size = 0x400, scoped, tag = 'input window, operand 1, single buffered']
    #allocation6 [shape = 's32[1]{0}', space=sflag, size = 0x4, scoped, tag = 'scoped memory for tpu_custom_call.1']
    #allocation7 [shape = 'u8[1024]{0}', space=vmem, size = 0x400, scoped, tag = 'input window, operand 2, single buffered']
    #allocation8 [shape = 'u8[786432]{0}', space=vmem, size = 0xc0000, scoped, tag = 'input window, operand 3, single buffered']
    #allocation9 [shape = 's32[1]{0}', space=sflag, size = 0x4, scoped, tag = 'scoped memory for tpu_custom_call.1']
    #allocation10 [shape = 'u8[1572864]{0}', space=vmem, size = 0x180000, scoped, tag = 'output window, operand 0']
    %9 = vsyncpa [#allocation3], 0
    %s10 = scalar_lea.sflag [#allocation3], 1
    %11 = vsyncpa %s10, 0
    %12 = vsyncpa [#allocation6], 0
    %13 = vsyncpa [#allocation9], 0
    %14 = vsyncpa [#allocation4], 0
    %s15 = scalar_lea.sflag [#allocation4], 1
    %16 = vsyncpa %s15, 0
    loop: start=0, step=1, limit=4
    $region2: #{tpu_custom_call.1} parent=1 // loop_pre_header
      _
    $region3: #{tpu_custom_call.1} parent=1 // loop_header
      %s18 = sphi 0, %s22
      %p19 = scmp.ge.s32.totalorder %s18, 4
      %s25 = sphi 0, %s44
      %s26 = sphi 0, %s40
      %s27 = sphi 0, %s36
      %s28 = sphi 0, %s25
      %s29 = sphi 0, %s26
      %s30 = sphi 0, %s27
      %s31 = sphi 0, %s28
      %s32 = sphi 0, %s29
      %s33 = sphi 0, %s30
      %s49 = sphi 0, %s51
      %s52 = sphi 0, %s49
      %s53 = sphi 0, %s52
      %s69 = sphi 0, %s53
      %s73 = sphi 0, %s73
      %s75 = sphi 0, %s73
      %s76 = sphi 0, %s75
      %s90 = sphi 0, %s76
      %s94 = sphi 0, %s94
      %s96 = sphi 0, %s94
      %s97 = sphi 0, %s96
      %s111 = sphi 0, %s97
      %s117 = sphi 0, %s119
      %s120 = sphi 0, %s117
      %s121 = sphi 0, %s120
      %s137 = sphi 0, %s121
      %s147 = sphi 0, %s149
      %s150 = sphi 0, %s147
      %s151 = sphi 0, %s150
      %s167 = sphi 0, %s151
    $region4: #{tpu_custom_call.1} parent=1 // loop_header_branch
      %21 = sbr.rel (%p19) target = $region8
    $region5: #{tpu_custom_call.1} parent=1 // loop_body
      %s23 = ssub.s32 %s18, 1
      %s24 = ssub.s32 %s18, 2
      %s34 = sadd.s32 1, %s27
      %p35 = scmp.ge.s32.totalorder %s34, 1
      %s36 = scalar_select %p35, 0, %s34
      %s37 = sadd.s32 1, %s26
      %s38 = scalar_select %p35, %s37, %s26
      %p39 = scmp.ge.s32.totalorder %s38, 1
      %s40 = scalar_select %p39, 0, %s38
      %s41 = sadd.s32 1, %s25
      %s42 = scalar_select %p39, %s41, %s25
      %p43 = scmp.ge.s32.totalorder %s42, 2
      %s44 = scalar_select %p43, 0, %s42
      %s45 = ssub.s32 %s25, %s44
      %s46 = ssub.s32 %s26, %s40
      %s47 = sor.u32 %s45, %s46
      %p48 = scmp.eq.s32.totalorder %s47, 0
      %s50 = sadd.s32 %s49, 1
      %s51 = scalar_select %p48, %s49, %s50
      %p54 = pneg %p48
      %p55 = scmp.eq.s32.totalorder %s18, 1
      %p56 = por %p54, %p55
      %p57 = scmp.ne.s32.totalorder %s49, %s52
      %p58 = scmp.eq.s32.totalorder %s18, 0
      %p59 = por %p57, %p58
      %p60 = scmp.ne.s32.totalorder %s49, %s52
      %p61 = scmp.eq.s32.totalorder %s23, 1
      %p62 = por %p60, %p61
      %p63 = scmp.ne.s32.totalorder %s52, %s53
      %p64 = scmp.eq.s32.totalorder %s23, 0
      %p65 = por %p63, %p64
      %p66 = scmp.ne.s32.totalorder %s52, %s53
      %p67 = scmp.eq.s32.totalorder %s24, 1
      %p68 = por %p66, %p67
      %p70 = scmp.ne.s32.totalorder %s53, %s69
      %p71 = scmp.eq.s32.totalorder %s24, 0
      %p72 = por %p70, %p71
      %s74 = sadd.s32 %s73, 1
      %p77 = scmp.eq.s32.totalorder %s18, 1
      %p78 = scmp.ne.s32.totalorder %s73, %s75
      %p79 = scmp.eq.s32.totalorder %s18, 0
      %p80 = por %p78, %p79
      %p81 = scmp.ne.s32.totalorder %s73, %s75
      %p82 = scmp.eq.s32.totalorder %s23, 1
      %p83 = por %p81, %p82
      %p84 = scmp.ne.s32.totalorder %s75, %s76
      %p85 = scmp.eq.s32.totalorder %s23, 0
      %p86 = por %p84, %p85
      %p87 = scmp.ne.s32.totalorder %s75, %s76
      %p88 = scmp.eq.s32.totalorder %s24, 1
      %p89 = por %p87, %p88
      %p91 = scmp.ne.s32.totalorder %s76, %s90
      %p92 = scmp.eq.s32.totalorder %s24, 0
      %p93 = por %p91, %p92
      %s95 = sadd.s32 %s94, 1
      %p98 = scmp.eq.s32.totalorder %s18, 1
      %p99 = scmp.ne.s32.totalorder %s94, %s96
      %p100 = scmp.eq.s32.totalorder %s18, 0
      %p101 = por %p99, %p100
      %p102 = scmp.ne.s32.totalorder %s94, %s96
      %p103 = scmp.eq.s32.totalorder %s23, 1
      %p104 = por %p102, %p103
      %p105 = scmp.ne.s32.totalorder %s96, %s97
      %p106 = scmp.eq.s32.totalorder %s23, 0
      %p107 = por %p105, %p106
      %p108 = scmp.ne.s32.totalorder %s96, %s97
      %p109 = scmp.eq.s32.totalorder %s24, 1
      %p110 = por %p108, %p109
      %p112 = scmp.ne.s32.totalorder %s97, %s111
      %p113 = scmp.eq.s32.totalorder %s24, 0
      %p114 = por %p112, %p113
      %s115 = ssub.s32 %s27, %s36
      %p116 = scmp.eq.s32.totalorder %s115, 0
      %s118 = sadd.s32 %s117, 1
      %s119 = scalar_select %p116, %s117, %s118
      %p122 = pneg %p116
      %p123 = scmp.eq.s32.totalorder %s18, 1
      %p124 = por %p122, %p123
      %p125 = scmp.ne.s32.totalorder %s117, %s120
      %p126 = scmp.eq.s32.totalorder %s18, 0
      %p127 = por %p125, %p126
      %p128 = scmp.ne.s32.totalorder %s117, %s120
      %p129 = scmp.eq.s32.totalorder %s23, 1
      %p130 = por %p128, %p129
      %p131 = scmp.ne.s32.totalorder %s120, %s121
      %p132 = scmp.eq.s32.totalorder %s23, 0
      %p133 = por %p131, %p132
      %p134 = scmp.ne.s32.totalorder %s120, %s121
      %p135 = scmp.eq.s32.totalorder %s24, 1
      %p136 = por %p134, %p135
      %p138 = scmp.ne.s32.totalorder %s121, %s137
      %p139 = scmp.eq.s32.totalorder %s24, 0
      %p140 = por %p138, %p139
      %s141 = ssub.s32 %s25, %s44
      %s142 = ssub.s32 %s26, %s40
      %s143 = sor.u32 %s141, %s142
      %s144 = ssub.s32 %s27, %s36
      %s145 = sor.u32 %s143, %s144
      %p146 = scmp.eq.s32.totalorder %s145, 0
      %s148 = sadd.s32 %s147, 1
      %s149 = scalar_select %p146, %s147, %s148
      %p152 = pneg %p146
      %p153 = scmp.eq.s32.totalorder %s18, 1
      %p154 = por %p152, %p153
      %p155 = scmp.ne.s32.totalorder %s147, %s150
      %p156 = scmp.eq.s32.totalorder %s18, 0
      %p157 = por %p155, %p156
      %p158 = scmp.ne.s32.totalorder %s147, %s150
      %p159 = scmp.eq.s32.totalorder %s23, 1
      %p160 = por %p158, %p159
      %p161 = scmp.ne.s32.totalorder %s150, %s151
      %p162 = scmp.eq.s32.totalorder %s23, 0
      %p163 = por %p161, %p162
      %p164 = scmp.ne.s32.totalorder %s150, %s151
      %p165 = scmp.eq.s32.totalorder %s24, 1
      %p166 = por %p164, %p165
      %p168 = scmp.ne.s32.totalorder %s151, %s167
      %p169 = scmp.eq.s32.totalorder %s24, 0
      %p170 = por %p168, %p169
      %p171 = scmp.le.s32.totalorder 1, %s18
      %p172 = scmp.lt.s32.totalorder %s18, 3
      %p173 = pnand %p171, %p172
      %p174 = pneg %p173
      // Predicated region
      $region9: #{tpu_custom_call.1} parent=5 // pred_check
        _
      $region10: #{tpu_custom_call.1} parent=5 // pred_check_branch
        %176 = sbr.rel (%p173) target = $region12
      $region11: #{tpu_custom_call.1} parent=5 // pred_region
        %s177 = ssub.s32 %s18, 1
        // Predicated region
        $region13: #{tpu_custom_call.1} parent=11 // pred_check
          %p178 = pneg %p86
        $region14: #{tpu_custom_call.1} parent=11 // pred_check_branch
          %180 = sbr.rel (%p178) target = $region16
        $region15: #{tpu_custom_call.1} parent=11 // pred_region
          %s182 = ssub.s32 32, 32
          %183 = vsyncadd [#allocation6], %s182
          %s185 = sshll.u32 [#allocation5], 4
          %s186 = int_to_ptr.vmem [resolvable:$true] %s185
          %188 = dma.hbm_to_vmem [thread:$0]  %s1, 32, %s186, [#allocation6]
        $region16: #{tpu_custom_call.1} parent=11 // pred_fallthru
          _
        // Predicated region
        $region17: #{tpu_custom_call.1} parent=11 // pred_check
          %p189 = pneg %p107
        $region18: #{tpu_custom_call.1} parent=11 // pred_check_branch
          %191 = sbr.rel (%p189) target = $region20
        $region19: #{tpu_custom_call.1} parent=11 // pred_region
          %s193 = ssub.s32 32, 32
          %194 = vsyncadd [#allocation6], %s193
          %s196 = sshll.u32 [#allocation7], 4
          %s197 = int_to_ptr.vmem [resolvable:$true] %s196
          %199 = dma.hbm_to_vmem [thread:$0]  %s2, 32, %s197, [#allocation6]
        $region20: #{tpu_custom_call.1} parent=11 // pred_fallthru
          _
        // Predicated region
        $region21: #{tpu_custom_call.1} parent=11 // pred_check
          %p200 = pneg %p133
        $region22: #{tpu_custom_call.1} parent=11 // pred_check_branch
          %202 = sbr.rel (%p200) target = $region24
        $region23: #{tpu_custom_call.1} parent=11 // pred_region
          %s203 = smul.u32 6, %s30
          %s205 = ssub.s32 24576, 24576
          %206 = vsyncadd [#allocation9], %s205
          %s207 = smul.addr %s203, 128
          %s208 = scalar_lea.hbm %s3, %s207
          %s209 = sshll.u32 [#allocation8], 4
          %s210 = int_to_ptr.vmem [resolvable:$true] %s209
          %215 = dma.hbm_to_vmem [thread:$0]  %s208, 24576, %s210, [#allocation9], 768, 768, 48
        $region24: #{tpu_custom_call.1} parent=11 // pred_fallthru
          _
      $region12: #{tpu_custom_call.1} parent=5 // pred_fallthru
        _
      %p216 = scmp.lt.s32.totalorder %s18, 2
      // Predicated region
      $region25: #{tpu_custom_call.1} parent=5 // pred_check
        %p217 = pneg %p216
      $region26: #{tpu_custom_call.1} parent=5 // pred_check_branch
        %219 = sbr.rel (%p217) target = $region28
      $region27: #{tpu_custom_call.1} parent=5 // pred_region
        // Predicated region
        $region29: #{tpu_custom_call.1} parent=27 // pred_check
          %p220 = pneg %p59
        $region30: #{tpu_custom_call.1} parent=27 // pred_check_branch
          %222 = sbr.rel (%p220) target = $region32
        $region31: #{tpu_custom_call.1} parent=27 // pred_region
          %s223 = sand.u32 %s49, 1
          %s224 = scalar_lea.sflag [#allocation3], %s223
          %s225 = sand.u32 %s49, 1
          %s226 = smul.addr %s225, 512
          %s227 = scalar_lea.vmem [#allocation2], %s226
          %s228 = smul.u32 32, %s26
          %s230 = ssub.s32 8192, 8192
          %231 = vsyncadd %s224, %s230
          %s232 = smul.addr %s228, 2
          %s233 = smul.addr %s25, 64
          %s234 = sadd.s32 %s232, %s233
          %s235 = smul.addr %s234, 128
          %s236 = scalar_lea.hbm %s0, %s235
          %s237 = sshll.u32 %s227, 4
          %s238 = int_to_ptr.vmem [resolvable:$true] %s237
          %243 = dma.hbm_to_vmem [thread:$0]  %s236, 8192, %s238, %s224, 256, 256, 16
        $region32: #{tpu_custom_call.1} parent=27 // pred_fallthru
          _
      $region28: #{tpu_custom_call.1} parent=5 // pred_fallthru
        _
      %p244 = scmp.le.s32.totalorder 1, %s18
      %p245 = scmp.lt.s32.totalorder %s18, 3
      %p246 = pnand %p244, %p245
      %p247 = pneg %p246
      // Predicated region
      $region33: #{tpu_custom_call.1} parent=5 // pred_check
        _
      $region34: #{tpu_custom_call.1} parent=5 // pred_check_branch
        %249 = sbr.rel (%p246) target = $region36
      $region35: #{tpu_custom_call.1} parent=5 // pred_region
        %s250 = ssub.s32 %s18, 1
        %s251 = sand.u32 %s52, 1
        %s252 = scalar_lea.sflag [#allocation3], %s251
        %s253 = sand.u32 %s52, 1
        %s254 = smul.addr %s253, 512
        %s255 = scalar_lea.vmem [#allocation2], %s254
        // Predicated region
        $region37: #{tpu_custom_call.1} parent=35 // pred_check
          %p256 = pneg %p65
        $region38: #{tpu_custom_call.1} parent=35 // pred_check_branch
          %258 = sbr.rel (%p256) target = $region40
        $region39: #{tpu_custom_call.1} parent=35 // pred_region
          %259 = dma.done %s252, 8192
        $region40: #{tpu_custom_call.1} parent=35 // pred_fallthru
          _
        // Predicated region
        $region41: #{tpu_custom_call.1} parent=35 // pred_check
          %p260 = pneg %p86
        $region42: #{tpu_custom_call.1} parent=35 // pred_check_branch
          %262 = sbr.rel (%p260) target = $region44
        $region43: #{tpu_custom_call.1} parent=35 // pred_region
          %263 = dma.done [#allocation6], 32
        $region44: #{tpu_custom_call.1} parent=35 // pred_fallthru
          _
        // Predicated region
        $region45: #{tpu_custom_call.1} parent=35 // pred_check
          %p264 = pneg %p107
        $region46: #{tpu_custom_call.1} parent=35 // pred_check_branch
          %266 = sbr.rel (%p264) target = $region48
        $region47: #{tpu_custom_call.1} parent=35 // pred_region
          %267 = dma.done [#allocation6], 32
        $region48: #{tpu_custom_call.1} parent=35 // pred_fallthru
          _
        // Predicated region
        $region49: #{tpu_custom_call.1} parent=35 // pred_check
          %p268 = pneg %p133
        $region50: #{tpu_custom_call.1} parent=35 // pred_check_branch
          %270 = sbr.rel (%p268) target = $region52
        $region51: #{tpu_custom_call.1} parent=35 // pred_region
          %271 = dma.done [#allocation9], 24576
        $region52: #{tpu_custom_call.1} parent=35 // pred_fallthru
          _
        %s272 = sand.u32 %s52, 1
        %s273 = scalar_lea.sflag [#allocation3], %s272
        %s274 = sand.u32 %s52, 1
        %s275 = smul.addr %s274, 512
        %s276 = scalar_lea.vmem [#allocation2], %s275
        %p277 = pneg %p65
        %p278 = pneg %p62
        %p279 = pneg %p86
        %p280 = pneg %p83
        %p281 = pneg %p107
        %p282 = pneg %p104
        %p283 = pneg %p133
        %p284 = pneg %p130
        %p285 = pneg %p163
        %p286 = pneg %p160
        %s287 = sand.u32 %s150, 1
        %s288 = scalar_lea.sflag [#allocation4], %s287
        %s289 = sand.u32 %s150, 1
        %s290 = smul.addr %s289, 1536
        %s291 = scalar_lea.vmem [#allocation10], %s290
        %s292 = smul.u32 32, %s29
        %s293 = smul.u32 6, %s30
        %s294 = smul.u32 32, %s29
        %s295 = smul.u32 6, %s30
        %v296 = vld [vmem:[%s255] sm:$0xff]
        %v297 = vld [vmem:[%s255 + $0x8] sm:$0xff]
        %v298 = vld [vmem:[%s255 + $0x10] sm:$0xff]
        %v299 = vld [vmem:[%s255 + $0x18] sm:$0xff]
        %v300 = vld [vmem:[%s255 + $0x20] sm:$0xff]
        %v301 = vld [vmem:[%s255 + $0x28] sm:$0xff]
        %v302 = vld [vmem:[%s255 + $0x30] sm:$0xff]
        %v303 = vld [vmem:[%s255 + $0x38] sm:$0xff]
        %v304 = vld [vmem:[%s255 + $0x40] sm:$0xff]
        %v305 = vld [vmem:[%s255 + $0x48] sm:$0xff]
        %v306 = vld [vmem:[%s255 + $0x50] sm:$0xff]
        %v307 = vld [vmem:[%s255 + $0x58] sm:$0xff]
        %v308 = vld [vmem:[%s255 + $0x60] sm:$0xff]
        %v309 = vld [vmem:[%s255 + $0x68] sm:$0xff]
        %v310 = vld [vmem:[%s255 + $0x70] sm:$0xff]
        %v311 = vld [vmem:[%s255 + $0x78] sm:$0xff]
        %v312 = vld [vmem:[%s255 + $0x80] sm:$0xff]
        %v313 = vld [vmem:[%s255 + $0x88] sm:$0xff]
        %v314 = vld [vmem:[%s255 + $0x90] sm:$0xff]
        %v315 = vld [vmem:[%s255 + $0x98] sm:$0xff]
        %v316 = vld [vmem:[%s255 + $0xa0] sm:$0xff]
        %v317 = vld [vmem:[%s255 + $0xa8] sm:$0xff]
        %v318 = vld [vmem:[%s255 + $0xb0] sm:$0xff]
        %v319 = vld [vmem:[%s255 + $0xb8] sm:$0xff]
        %v320 = vld [vmem:[%s255 + $0xc0] sm:$0xff]
        %v321 = vld [vmem:[%s255 + $0xc8] sm:$0xff]
        %v322 = vld [vmem:[%s255 + $0xd0] sm:$0xff]
        %v323 = vld [vmem:[%s255 + $0xd8] sm:$0xff]
        %v324 = vld [vmem:[%s255 + $0xe0] sm:$0xff]
        %v325 = vld [vmem:[%s255 + $0xe8] sm:$0xff]
        %v326 = vld [vmem:[%s255 + $0xf0] sm:$0xff]
        %v327 = vld [vmem:[%s255 + $0xf8] sm:$0xff]
        %v328 = vld [vmem:[%s255 + $0x100] sm:$0xff]
        %v329 = vld [vmem:[%s255 + $0x108] sm:$0xff]
        %v330 = vld [vmem:[%s255 + $0x110] sm:$0xff]
        %v331 = vld [vmem:[%s255 + $0x118] sm:$0xff]
        %v332 = vld [vmem:[%s255 + $0x120] sm:$0xff]
        %v333 = vld [vmem:[%s255 + $0x128] sm:$0xff]
        %v334 = vld [vmem:[%s255 + $0x130] sm:$0xff]
        %v335 = vld [vmem:[%s255 + $0x138] sm:$0xff]
        %v336 = vld [vmem:[%s255 + $0x140] sm:$0xff]
        %v337 = vld [vmem:[%s255 + $0x148] sm:$0xff]
        %v338 = vld [vmem:[%s255 + $0x150] sm:$0xff]
        %v339 = vld [vmem:[%s255 + $0x158] sm:$0xff]
        %v340 = vld [vmem:[%s255 + $0x160] sm:$0xff]
        %v341 = vld [vmem:[%s255 + $0x168] sm:$0xff]
        %v342 = vld [vmem:[%s255 + $0x170] sm:$0xff]
        %v343 = vld [vmem:[%s255 + $0x178] sm:$0xff]
        %v344 = vld [vmem:[%s255 + $0x180] sm:$0xff]
        %v345 = vld [vmem:[%s255 + $0x188] sm:$0xff]
        %v346 = vld [vmem:[%s255 + $0x190] sm:$0xff]
        %v347 = vld [vmem:[%s255 + $0x198] sm:$0xff]
        %v348 = vld [vmem:[%s255 + $0x1a0] sm:$0xff]
        %v349 = vld [vmem:[%s255 + $0x1a8] sm:$0xff]
        %v350 = vld [vmem:[%s255 + $0x1b0] sm:$0xff]
        %v351 = vld [vmem:[%s255 + $0x1b8] sm:$0xff]
        %v352 = vld [vmem:[%s255 + $0x1c0] sm:$0xff]
        %v353 = vld [vmem:[%s255 + $0x1c8] sm:$0xff]
        %v354 = vld [vmem:[%s255 + $0x1d0] sm:$0xff]
        %v355 = vld [vmem:[%s255 + $0x1d8] sm:$0xff]
        %v356 = vld [vmem:[%s255 + $0x1e0] sm:$0xff]
        %v357 = vld [vmem:[%s255 + $0x1e8] sm:$0xff]
        %v358 = vld [vmem:[%s255 + $0x1f0] sm:$0xff]
        %v359 = vld [vmem:[%s255 + $0x1f8] sm:$0xff]
        %v360 = vld [vmem:[#allocation5] sm:$0x3]
        %v361 = vld [vmem:[#allocation7] sm:$0x3]
        %v362 = vadd.f32 %v296, %v297
        %363 = vadd.xlane.f32.xlu0 %v362
        %v364 = vpop.xlane.xlu0 %363
        %v365 = vadd.f32 %v298, %v299
        %366 = vadd.xlane.f32.xlu0 %v365
        %v367 = vpop.xlane.xlu0 %366
        %v368 = vadd.f32 %v300, %v301
        %369 = vadd.xlane.f32.xlu0 %v368
        %v370 = vpop.xlane.xlu0 %369
        %v371 = vadd.f32 %v302, %v303
        %372 = vadd.xlane.f32.xlu0 %v371
        %v373 = vpop.xlane.xlu0 %372
        %v374 = vadd.f32 %v304, %v305
        %375 = vadd.xlane.f32.xlu0 %v374
        %v376 = vpop.xlane.xlu0 %375
        %v377 = vadd.f32 %v306, %v307
        %378 = vadd.xlane.f32.xlu0 %v377
        %v379 = vpop.xlane.xlu0 %378
        %v380 = vadd.f32 %v308, %v309
        %381 = vadd.xlane.f32.xlu0 %v380
        %v382 = vpop.xlane.xlu0 %381
        %v383 = vadd.f32 %v310, %v311
        %384 = vadd.xlane.f32.xlu0 %v383
        %v385 = vpop.xlane.xlu0 %384
        %v386 = vadd.f32 %v312, %v313
        %387 = vadd.xlane.f32.xlu0 %v386
        %v388 = vpop.xlane.xlu0 %387
        %v389 = vadd.f32 %v314, %v315
        %390 = vadd.xlane.f32.xlu0 %v389
        %v391 = vpop.xlane.xlu0 %390
        %v392 = vadd.f32 %v316, %v317
        %393 = vadd.xlane.f32.xlu0 %v392
        %v394 = vpop.xlane.xlu0 %393
        %v395 = vadd.f32 %v318, %v319
        %396 = vadd.xlane.f32.xlu0 %v395
        %v397 = vpop.xlane.xlu0 %396
        %v398 = vadd.f32 %v320, %v321
        %399 = vadd.xlane.f32.xlu0 %v398
        %v400 = vpop.xlane.xlu0 %399
        %v401 = vadd.f32 %v322, %v323
        %402 = vadd.xlane.f32.xlu0 %v401
        %v403 = vpop.xlane.xlu0 %402
        %v404 = vadd.f32 %v324, %v325
        %405 = vadd.xlane.f32.xlu0 %v404
        %v406 = vpop.xlane.xlu0 %405
        %v407 = vadd.f32 %v326, %v327
        %408 = vadd.xlane.f32.xlu0 %v407
        %v409 = vpop.xlane.xlu0 %408
        %v410 = vadd.f32 %v328, %v329
        %411 = vadd.xlane.f32.xlu0 %v410
        %v412 = vpop.xlane.xlu0 %411
        %v413 = vadd.f32 %v330, %v331
        %414 = vadd.xlane.f32.xlu0 %v413
        %v415 = vpop.xlane.xlu0 %414
        %v416 = vadd.f32 %v332, %v333
        %417 = vadd.xlane.f32.xlu0 %v416
        %v418 = vpop.xlane.xlu0 %417
        %v419 = vadd.f32 %v334, %v335
        %420 = vadd.xlane.f32.xlu0 %v419
        %v421 = vpop.xlane.xlu0 %420
        %v422 = vadd.f32 %v336, %v337
        %423 = vadd.xlane.f32.xlu0 %v422
        %v424 = vpop.xlane.xlu0 %423
        %v425 = vadd.f32 %v338, %v339
        %426 = vadd.xlane.f32.xlu0 %v425
        %v427 = vpop.xlane.xlu0 %426
        %v428 = vadd.f32 %v340, %v341
        %429 = vadd.xlane.f32.xlu0 %v428
        %v430 = vpop.xlane.xlu0 %429
        %v431 = vadd.f32 %v342, %v343
        %432 = vadd.xlane.f32.xlu0 %v431
        %v433 = vpop.xlane.xlu0 %432
        %v434 = vadd.f32 %v344, %v345
        %435 = vadd.xlane.f32.xlu0 %v434
        %v436 = vpop.xlane.xlu0 %435
        %v437 = vadd.f32 %v346, %v347
        %438 = vadd.xlane.f32.xlu0 %v437
        %v439 = vpop.xlane.xlu0 %438
        %v440 = vadd.f32 %v348, %v349
        %441 = vadd.xlane.f32.xlu0 %v440
        %v442 = vpop.xlane.xlu0 %441
        %v443 = vadd.f32 %v350, %v351
        %444 = vadd.xlane.f32.xlu0 %v443
        %v445 = vpop.xlane.xlu0 %444
        %v446 = vadd.f32 %v352, %v353
        %447 = vadd.xlane.f32.xlu0 %v446
        %v448 = vpop.xlane.xlu0 %447
        %v449 = vadd.f32 %v354, %v355
        %450 = vadd.xlane.f32.xlu0 %v449
        %v451 = vpop.xlane.xlu0 %450
        %v452 = vadd.f32 %v356, %v357
        %453 = vadd.xlane.f32.xlu0 %v452
        %v454 = vpop.xlane.xlu0 %453
        %v455 = vadd.f32 %v358, %v359
        %456 = vadd.xlane.f32.xlu0 %v455
        %v457 = vpop.xlane.xlu0 %456
        %v458 = vrcp.pop 256.0
        %v459 = vmul.f32 %v364, %v458
        %v460 = vmul.f32 %v367, %v458
        %v461 = vmul.f32 %v370, %v458
        %v462 = vmul.f32 %v373, %v458
        %v463 = vmul.f32 %v376, %v458
        %v464 = vmul.f32 %v379, %v458
        %v465 = vmul.f32 %v382, %v458
        %v466 = vmul.f32 %v385, %v458
        %v467 = vmul.f32 %v388, %v458
        %v468 = vmul.f32 %v391, %v458
        %v469 = vmul.f32 %v394, %v458
        %v470 = vmul.f32 %v397, %v458
        %v471 = vmul.f32 %v400, %v458
        %v472 = vmul.f32 %v403, %v458
        %v473 = vmul.f32 %v406, %v458
        %v474 = vmul.f32 %v409, %v458
        %v475 = vmul.f32 %v412, %v458
        %v476 = vmul.f32 %v415, %v458
        %v477 = vmul.f32 %v418, %v458
        %v478 = vmul.f32 %v421, %v458
        %v479 = vmul.f32 %v424, %v458
        %v480 = vmul.f32 %v427, %v458
        %v481 = vmul.f32 %v430, %v458
        %v482 = vmul.f32 %v433, %v458
        %v483 = vmul.f32 %v436, %v458
        %v484 = vmul.f32 %v439, %v458
        %v485 = vmul.f32 %v442, %v458
        %v486 = vmul.f32 %v445, %v458
        %v487 = vmul.f32 %v448, %v458
        %v488 = vmul.f32 %v451, %v458
        %v489 = vmul.f32 %v454, %v458
        %v490 = vmul.f32 %v457, %v458
        %v491 = vsub.f32 %v296, %v459
        %v492 = vsub.f32 %v297, %v459
        %v493 = vsub.f32 %v298, %v460
        %v494 = vsub.f32 %v299, %v460
        %v495 = vsub.f32 %v300, %v461
        %v496 = vsub.f32 %v301, %v461
        %v497 = vsub.f32 %v302, %v462
        %v498 = vsub.f32 %v303, %v462
        %v499 = vsub.f32 %v304, %v463
        %v500 = vsub.f32 %v305, %v463
        %v501 = vsub.f32 %v306, %v464
        %v502 = vsub.f32 %v307, %v464
        %v503 = vsub.f32 %v308, %v465
        %v504 = vsub.f32 %v309, %v465
        %v505 = vsub.f32 %v310, %v466
        %v506 = vsub.f32 %v311, %v466
        %v507 = vsub.f32 %v312, %v467
        %v508 = vsub.f32 %v313, %v467
        %v509 = vsub.f32 %v314, %v468
        %v510 = vsub.f32 %v315, %v468
        %v511 = vsub.f32 %v316, %v469
        %v512 = vsub.f32 %v317, %v469
        %v513 = vsub.f32 %v318, %v470
        %v514 = vsub.f32 %v319, %v470
        %v515 = vsub.f32 %v320, %v471
        %v516 = vsub.f32 %v321, %v471
        %v517 = vsub.f32 %v322, %v472
        %v518 = vsub.f32 %v323, %v472
        %v519 = vsub.f32 %v324, %v473
        %v520 = vsub.f32 %v325, %v473
        %v521 = vsub.f32 %v326, %v474
        %v522 = vsub.f32 %v327, %v474
        %v523 = vsub.f32 %v328, %v475
        %v524 = vsub.f32 %v329, %v475
        %v525 = vsub.f32 %v330, %v476
        %v526 = vsub.f32 %v331, %v476
        %v527 = vsub.f32 %v332, %v477
        %v528 = vsub.f32 %v333, %v477
        %v529 = vsub.f32 %v334, %v478
        %v530 = vsub.f32 %v335, %v478
        %v531 = vsub.f32 %v336, %v479
        %v532 = vsub.f32 %v337, %v479
        %v533 = vsub.f32 %v338, %v480
        %v534 = vsub.f32 %v339, %v480
        %v535 = vsub.f32 %v340, %v481
        %v536 = vsub.f32 %v341, %v481
        %v537 = vsub.f32 %v342, %v482
        %v538 = vsub.f32 %v343, %v482
        %v539 = vsub.f32 %v344, %v483
        %v540 = vsub.f32 %v345, %v483
        %v541 = vsub.f32 %v346, %v484
        %v542 = vsub.f32 %v347, %v484
        %v543 = vsub.f32 %v348, %v485
        %v544 = vsub.f32 %v349, %v485
        %v545 = vsub.f32 %v350, %v486
        %v546 = vsub.f32 %v351, %v486
        %v547 = vsub.f32 %v352, %v487
        %v548 = vsub.f32 %v353, %v487
        %v549 = vsub.f32 %v354, %v488
        %v550 = vsub.f32 %v355, %v488
        %v551 = vsub.f32 %v356, %v489
        %v552 = vsub.f32 %v357, %v489
        %v553 = vsub.f32 %v358, %v490
        %v554 = vsub.f32 %v359, %v490
        %v555 = vmul.f32 %v491, %v491
        %v556 = vmul.f32 %v492, %v492
        %v557 = vmul.f32 %v493, %v493
        %v558 = vmul.f32 %v494, %v494
        %v559 = vmul.f32 %v495, %v495
        %v560 = vmul.f32 %v496, %v496
        %v561 = vmul.f32 %v497, %v497
        %v562 = vmul.f32 %v498, %v498
        %v563 = vmul.f32 %v499, %v499
        %v564 = vmul.f32 %v500, %v500
        %v565 = vmul.f32 %v501, %v501
        %v566 = vmul.f32 %v502, %v502
        %v567 = vmul.f32 %v503, %v503
        %v568 = vmul.f32 %v504, %v504
        %v569 = vmul.f32 %v505, %v505
        %v570 = vmul.f32 %v506, %v506
        %v571 = vmul.f32 %v507, %v507
        %v572 = vmul.f32 %v508, %v508
        %v573 = vmul.f32 %v509, %v509
        %v574 = vmul.f32 %v510, %v510
        %v575 = vmul.f32 %v511, %v511
        %v576 = vmul.f32 %v512, %v512
        %v577 = vmul.f32 %v513, %v513
        %v578 = vmul.f32 %v514, %v514
        %v579 = vmul.f32 %v515, %v515
        %v580 = vmul.f32 %v516, %v516
        %v581 = vmul.f32 %v517, %v517
        %v582 = vmul.f32 %v518, %v518
        %v583 = vmul.f32 %v519, %v519
        %v584 = vmul.f32 %v520, %v520
        %v585 = vmul.f32 %v521, %v521
        %v586 = vmul.f32 %v522, %v522
        %v587 = vmul.f32 %v523, %v523
        %v588 = vmul.f32 %v524, %v524
        %v589 = vmul.f32 %v525, %v525
        %v590 = vmul.f32 %v526, %v526
        %v591 = vmul.f32 %v527, %v527
        %v592 = vmul.f32 %v528, %v528
        %v593 = vmul.f32 %v529, %v529
        %v594 = vmul.f32 %v530, %v530
        %v595 = vmul.f32 %v531, %v531
        %v596 = vmul.f32 %v532, %v532
        %v597 = vmul.f32 %v533, %v533
        %v598 = vmul.f32 %v534, %v534
        %v599 = vmul.f32 %v535, %v535
        %v600 = vmul.f32 %v536, %v536
        %v601 = vmul.f32 %v537, %v537
        %v602 = vmul.f32 %v538, %v538
        %v603 = vmul.f32 %v539, %v539
        %v604 = vmul.f32 %v540, %v540
        %v605 = vmul.f32 %v541, %v541
        %v606 = vmul.f32 %v542, %v542
        %v607 = vmul.f32 %v543, %v543
        %v608 = vmul.f32 %v544, %v544
        %v609 = vmul.f32 %v545, %v545
        %v610 = vmul.f32 %v546, %v546
        %v611 = vmul.f32 %v547, %v547
        %v612 = vmul.f32 %v548, %v548
        %v613 = vmul.f32 %v549, %v549
        %v614 = vmul.f32 %v550, %v550
        %v615 = vmul.f32 %v551, %v551
        %v616 = vmul.f32 %v552, %v552
        %v617 = vmul.f32 %v553, %v553
        %v618 = vmul.f32 %v554, %v554
        %v619 = vadd.f32 %v555, %v556
        %620 = vadd.xlane.f32.xlu0 %v619
        %v621 = vpop.xlane.xlu0 %620
        %v622 = vadd.f32 %v557, %v558
        %623 = vadd.xlane.f32.xlu0 %v622
        %v624 = vpop.xlane.xlu0 %623
        %v625 = vadd.f32 %v559, %v560
        %626 = vadd.xlane.f32.xlu0 %v625
        %v627 = vpop.xlane.xlu0 %626
        %v628 = vadd.f32 %v561, %v562
        %629 = vadd.xlane.f32.xlu0 %v628
        %v630 = vpop.xlane.xlu0 %629
        %v631 = vadd.f32 %v563, %v564
        %632 = vadd.xlane.f32.xlu0 %v631
        %v633 = vpop.xlane.xlu0 %632
        %v634 = vadd.f32 %v565, %v566
        %635 = vadd.xlane.f32.xlu0 %v634
        %v636 = vpop.xlane.xlu0 %635
        %v637 = vadd.f32 %v567, %v568
        %638 = vadd.xlane.f32.xlu0 %v637
        %v639 = vpop.xlane.xlu0 %638
        %v640 = vadd.f32 %v569, %v570
        %641 = vadd.xlane.f32.xlu0 %v640
        %v642 = vpop.xlane.xlu0 %641
        %v643 = vadd.f32 %v571, %v572
        %644 = vadd.xlane.f32.xlu0 %v643
        %v645 = vpop.xlane.xlu0 %644
        %v646 = vadd.f32 %v573, %v574
        %647 = vadd.xlane.f32.xlu0 %v646
        %v648 = vpop.xlane.xlu0 %647
        %v649 = vadd.f32 %v575, %v576
        %650 = vadd.xlane.f32.xlu0 %v649
        %v651 = vpop.xlane.xlu0 %650
        %v652 = vadd.f32 %v577, %v578
        %653 = vadd.xlane.f32.xlu0 %v652
        %v654 = vpop.xlane.xlu0 %653
        %v655 = vadd.f32 %v579, %v580
        %656 = vadd.xlane.f32.xlu0 %v655
        %v657 = vpop.xlane.xlu0 %656
        %v658 = vadd.f32 %v581, %v582
        %659 = vadd.xlane.f32.xlu0 %v658
        %v660 = vpop.xlane.xlu0 %659
        %v661 = vadd.f32 %v583, %v584
        %662 = vadd.xlane.f32.xlu0 %v661
        %v663 = vpop.xlane.xlu0 %662
        %v664 = vadd.f32 %v585, %v586
        %665 = vadd.xlane.f32.xlu0 %v664
        %v666 = vpop.xlane.xlu0 %665
        %v667 = vadd.f32 %v587, %v588
        %668 = vadd.xlane.f32.xlu0 %v667
        %v669 = vpop.xlane.xlu0 %668
        %v670 = vadd.f32 %v589, %v590
        %671 = vadd.xlane.f32.xlu0 %v670
        %v672 = vpop.xlane.xlu0 %671
        %v673 = vadd.f32 %v591, %v592
        %674 = vadd.xlane.f32.xlu0 %v673
        %v675 = vpop.xlane.xlu0 %674
        %v676 = vadd.f32 %v593, %v594
        %677 = vadd.xlane.f32.xlu0 %v676
        %v678 = vpop.xlane.xlu0 %677
        %v679 = vadd.f32 %v595, %v596
        %680 = vadd.xlane.f32.xlu0 %v679
        %v681 = vpop.xlane.xlu0 %680
        %v682 = vadd.f32 %v597, %v598
        %683 = vadd.xlane.f32.xlu0 %v682
        %v684 = vpop.xlane.xlu0 %683
        %v685 = vadd.f32 %v599, %v600
        %686 = vadd.xlane.f32.xlu0 %v685
        %v687 = vpop.xlane.xlu0 %686
        %v688 = vadd.f32 %v601, %v602
        %689 = vadd.xlane.f32.xlu0 %v688
        %v690 = vpop.xlane.xlu0 %689
        %v691 = vadd.f32 %v603, %v604
        %692 = vadd.xlane.f32.xlu0 %v691
        %v693 = vpop.xlane.xlu0 %692
        %v694 = vadd.f32 %v605, %v606
        %695 = vadd.xlane.f32.xlu0 %v694
        %v696 = vpop.xlane.xlu0 %695
        %v697 = vadd.f32 %v607, %v608
        %698 = vadd.xlane.f32.xlu0 %v697
        %v699 = vpop.xlane.xlu0 %698
        %v700 = vadd.f32 %v609, %v610
        %701 = vadd.xlane.f32.xlu0 %v700
        %v702 = vpop.xlane.xlu0 %701
        %v703 = vadd.f32 %v611, %v612
        %704 = vadd.xlane.f32.xlu0 %v703
        %v705 = vpop.xlane.xlu0 %704
        %v706 = vadd.f32 %v613, %v614
        %707 = vadd.xlane.f32.xlu0 %v706
        %v708 = vpop.xlane.xlu0 %707
        %v709 = vadd.f32 %v615, %v616
        %710 = vadd.xlane.f32.xlu0 %v709
        %v711 = vpop.xlane.xlu0 %710
        %v712 = vadd.f32 %v617, %v618
        %713 = vadd.xlane.f32.xlu0 %v712
        %v714 = vpop.xlane.xlu0 %713
        %v715 = vmul.f32 %v621, %v458
        %v716 = vmul.f32 %v624, %v458
        %v717 = vmul.f32 %v627, %v458
        %v718 = vmul.f32 %v630, %v458
        %v719 = vmul.f32 %v633, %v458
        %v720 = vmul.f32 %v636, %v458
        %v721 = vmul.f32 %v639, %v458
        %v722 = vmul.f32 %v642, %v458
        %v723 = vmul.f32 %v645, %v458
        %v724 = vmul.f32 %v648, %v458
        %v725 = vmul.f32 %v651, %v458
        %v726 = vmul.f32 %v654, %v458
        %v727 = vmul.f32 %v657, %v458
        %v728 = vmul.f32 %v660, %v458
        %v729 = vmul.f32 %v663, %v458
        %v730 = vmul.f32 %v666, %v458
        %v731 = vmul.f32 %v669, %v458
        %v732 = vmul.f32 %v672, %v458
        %v733 = vmul.f32 %v675, %v458
        %v734 = vmul.f32 %v678, %v458
        %v735 = vmul.f32 %v681, %v458
        %v736 = vmul.f32 %v684, %v458
        %v737 = vmul.f32 %v687, %v458
        %v738 = vmul.f32 %v690, %v458
        %v739 = vmul.f32 %v693, %v458
        %v740 = vmul.f32 %v696, %v458
        %v741 = vmul.f32 %v699, %v458
        %v742 = vmul.f32 %v702, %v458
        %v743 = vmul.f32 %v705, %v458
        %v744 = vmul.f32 %v708, %v458
        %v745 = vmul.f32 %v711, %v458
        %v746 = vmul.f32 %v714, %v458
        %v747 = vadd.f32 %v715, 1e-06
        %v748 = vadd.f32 %v716, 1e-06
        %v749 = vadd.f32 %v717, 1e-06
        %v750 = vadd.f32 %v718, 1e-06
        %v751 = vadd.f32 %v719, 1e-06
        %v752 = vadd.f32 %v720, 1e-06
        %v753 = vadd.f32 %v721, 1e-06
        %v754 = vadd.f32 %v722, 1e-06
        %v755 = vadd.f32 %v723, 1e-06
        %v756 = vadd.f32 %v724, 1e-06
        %v757 = vadd.f32 %v725, 1e-06
        %v758 = vadd.f32 %v726, 1e-06
        %v759 = vadd.f32 %v727, 1e-06
        %v760 = vadd.f32 %v728, 1e-06
        %v761 = vadd.f32 %v729, 1e-06
        %v762 = vadd.f32 %v730, 1e-06
        %v763 = vadd.f32 %v731, 1e-06
        %v764 = vadd.f32 %v732, 1e-06
        %v765 = vadd.f32 %v733, 1e-06
        %v766 = vadd.f32 %v734, 1e-06
        %v767 = vadd.f32 %v735, 1e-06
        %v768 = vadd.f32 %v736, 1e-06
        %v769 = vadd.f32 %v737, 1e-06
        %v770 = vadd.f32 %v738, 1e-06
        %v771 = vadd.f32 %v739, 1e-06
        %v772 = vadd.f32 %v740, 1e-06
        %v773 = vadd.f32 %v741, 1e-06
        %v774 = vadd.f32 %v742, 1e-06
        %v775 = vadd.f32 %v743, 1e-06
        %v776 = vadd.f32 %v744, 1e-06
        %v777 = vadd.f32 %v745, 1e-06
        %v778 = vadd.f32 %v746, 1e-06
        %v779 = vrsqrt.pop %v747
        %v780 = vrsqrt.pop %v748
        %v781 = vrsqrt.pop %v749
        %v782 = vrsqrt.pop %v750
        %v783 = vrsqrt.pop %v751
        %v784 = vrsqrt.pop %v752
        %v785 = vrsqrt.pop %v753
        %v786 = vrsqrt.pop %v754
        %v787 = vrsqrt.pop %v755
        %v788 = vrsqrt.pop %v756
        %v789 = vrsqrt.pop %v757
        %v790 = vrsqrt.pop %v758
        %v791 = vrsqrt.pop %v759
        %v792 = vrsqrt.pop %v760
        %v793 = vrsqrt.pop %v761
        %v794 = vrsqrt.pop %v762
        %v795 = vrsqrt.pop %v763
        %v796 = vrsqrt.pop %v764
        %v797 = vrsqrt.pop %v765
        %v798 = vrsqrt.pop %v766
        %v799 = vrsqrt.pop %v767
        %v800 = vrsqrt.pop %v768
        %v801 = vrsqrt.pop %v769
        %v802 = vrsqrt.pop %v770
        %v803 = vrsqrt.pop %v771
        %v804 = vrsqrt.pop %v772
        %v805 = vrsqrt.pop %v773
        %v806 = vrsqrt.pop %v774
        %v807 = vrsqrt.pop %v775
        %v808 = vrsqrt.pop %v776
        %v809 = vrsqrt.pop %v777
        %v810 = vrsqrt.pop %v778
        %v811 = vmul.f32 %v491, %v779
        %v812 = vmul.f32 %v492, %v779
        %v813 = vmul.f32 %v493, %v780
        %v814 = vmul.f32 %v494, %v780
        %v815 = vmul.f32 %v495, %v781
        %v816 = vmul.f32 %v496, %v781
        %v817 = vmul.f32 %v497, %v782
        %v818 = vmul.f32 %v498, %v782
        %v819 = vmul.f32 %v499, %v783
        %v820 = vmul.f32 %v500, %v783
        %v821 = vmul.f32 %v501, %v784
        %v822 = vmul.f32 %v502, %v784
        %v823 = vmul.f32 %v503, %v785
        %v824 = vmul.f32 %v504, %v785
        %v825 = vmul.f32 %v505, %v786
        %v826 = vmul.f32 %v506, %v786
        %v827 = vmul.f32 %v507, %v787
        %v828 = vmul.f32 %v508, %v787
        %v829 = vmul.f32 %v509, %v788
        %v830 = vmul.f32 %v510, %v788
        %v831 = vmul.f32 %v511, %v789
        %v832 = vmul.f32 %v512, %v789
        %v833 = vmul.f32 %v513, %v790
        %v834 = vmul.f32 %v514, %v790
        %v835 = vmul.f32 %v515, %v791
        %v836 = vmul.f32 %v516, %v791
        %v837 = vmul.f32 %v517, %v792
        %v838 = vmul.f32 %v518, %v792
        %v839 = vmul.f32 %v519, %v793
        %v840 = vmul.f32 %v520, %v793
        %v841 = vmul.f32 %v521, %v794
        %v842 = vmul.f32 %v522, %v794
        %v843 = vmul.f32 %v523, %v795
        %v844 = vmul.f32 %v524, %v795
        %v845 = vmul.f32 %v525, %v796
        %v846 = vmul.f32 %v526, %v796
        %v847 = vmul.f32 %v527, %v797
        %v848 = vmul.f32 %v528, %v797
        %v849 = vmul.f32 %v529, %v798
        %v850 = vmul.f32 %v530, %v798
        %v851 = vmul.f32 %v531, %v799
        %v852 = vmul.f32 %v532, %v799
        %v853 = vmul.f32 %v533, %v800
        %v854 = vmul.f32 %v534, %v800
        %v855 = vmul.f32 %v535, %v801
        %v856 = vmul.f32 %v536, %v801
        %v857 = vmul.f32 %v537, %v802
        %v858 = vmul.f32 %v538, %v802
        %v859 = vmul.f32 %v539, %v803
        %v860 = vmul.f32 %v540, %v803
        %v861 = vmul.f32 %v541, %v804
        %v862 = vmul.f32 %v542, %v804
        %v863 = vmul.f32 %v543, %v805
        %v864 = vmul.f32 %v544, %v805
        %v865 = vmul.f32 %v545, %v806
        %v866 = vmul.f32 %v546, %v806
        %v867 = vmul.f32 %v547, %v807
        %v868 = vmul.f32 %v548, %v807
        %v869 = vmul.f32 %v549, %v808
        %v870 = vmul.f32 %v550, %v808
        %v871 = vmul.f32 %v551, %v809
        %v872 = vmul.f32 %v552, %v809
        %v873 = vmul.f32 %v553, %v810
        %v874 = vmul.f32 %v554, %v810
        %v876 = vlaneseq
        %v877 = vshrl.u32 %v876, 7
        %v878 = vsub.s32 0, %v877
        %v879 = vrot.slane %v360, %v878
        %v880 = vlaneseq
        %v881 = vshrl.u32 %v880, 7
        %v882 = vsub.s32 1, %v881
        %v883 = vrot.slane %v360, %v882
        %v886 = vmul.f32 %v879, %v811
        %v887 = vmul.f32 %v883, %v812
        %v888 = vmul.f32 %v879, %v813
        %v889 = vmul.f32 %v883, %v814
        %v890 = vmul.f32 %v879, %v815
        %v891 = vmul.f32 %v883, %v816
        %v892 = vmul.f32 %v879, %v817
        %v893 = vmul.f32 %v883, %v818
        %v894 = vmul.f32 %v879, %v819
        %v895 = vmul.f32 %v883, %v820
        %v896 = vmul.f32 %v879, %v821
        %v897 = vmul.f32 %v883, %v822
        %v898 = vmul.f32 %v879, %v823
        %v899 = vmul.f32 %v883, %v824
        %v900 = vmul.f32 %v879, %v825
        %v901 = vmul.f32 %v883, %v826
        %v902 = vmul.f32 %v879, %v827
        %v903 = vmul.f32 %v883, %v828
        %v904 = vmul.f32 %v879, %v829
        %v905 = vmul.f32 %v883, %v830
        %v906 = vmul.f32 %v879, %v831
        %v907 = vmul.f32 %v883, %v832
        %v908 = vmul.f32 %v879, %v833
        %v909 = vmul.f32 %v883, %v834
        %v910 = vmul.f32 %v879, %v835
        %v911 = vmul.f32 %v883, %v836
        %v912 = vmul.f32 %v879, %v837
        %v913 = vmul.f32 %v883, %v838
        %v914 = vmul.f32 %v879, %v839
        %v915 = vmul.f32 %v883, %v840
        %v916 = vmul.f32 %v879, %v841
        %v917 = vmul.f32 %v883, %v842
        %v918 = vmul.f32 %v879, %v843
        %v919 = vmul.f32 %v883, %v844
        %v920 = vmul.f32 %v879, %v845
        %v921 = vmul.f32 %v883, %v846
        %v922 = vmul.f32 %v879, %v847
        %v923 = vmul.f32 %v883, %v848
        %v924 = vmul.f32 %v879, %v849
        %v925 = vmul.f32 %v883, %v850
        %v926 = vmul.f32 %v879, %v851
        %v927 = vmul.f32 %v883, %v852
        %v928 = vmul.f32 %v879, %v853
        %v929 = vmul.f32 %v883, %v854
        %v930 = vmul.f32 %v879, %v855
        %v931 = vmul.f32 %v883, %v856
        %v932 = vmul.f32 %v879, %v857
        %v933 = vmul.f32 %v883, %v858
        %v934 = vmul.f32 %v879, %v859
        %v935 = vmul.f32 %v883, %v860
        %v936 = vmul.f32 %v879, %v861
        %v937 = vmul.f32 %v883, %v862
        %v938 = vmul.f32 %v879, %v863
        %v939 = vmul.f32 %v883, %v864
        %v940 = vmul.f32 %v879, %v865
        %v941 = vmul.f32 %v883, %v866
        %v942 = vmul.f32 %v879, %v867
        %v943 = vmul.f32 %v883, %v868
        %v944 = vmul.f32 %v879, %v869
        %v945 = vmul.f32 %v883, %v870
        %v946 = vmul.f32 %v879, %v871
        %v947 = vmul.f32 %v883, %v872
        %v948 = vmul.f32 %v879, %v873
        %v949 = vmul.f32 %v883, %v874
        %v951 = vlaneseq
        %v952 = vshrl.u32 %v951, 7
        %v953 = vsub.s32 0, %v952
        %v954 = vrot.slane %v361, %v953
        %v955 = vlaneseq
        %v956 = vshrl.u32 %v955, 7
        %v957 = vsub.s32 1, %v956
        %v958 = vrot.slane %v361, %v957
        %v961 = vadd.f32 %v886, %v954
        %v962 = vadd.f32 %v887, %v958
        %v963 = vadd.f32 %v888, %v954
        %v964 = vadd.f32 %v889, %v958
        %v965 = vadd.f32 %v890, %v954
        %v966 = vadd.f32 %v891, %v958
        %v967 = vadd.f32 %v892, %v954
        %v968 = vadd.f32 %v893, %v958
        %v969 = vadd.f32 %v894, %v954
        %v970 = vadd.f32 %v895, %v958
        %v971 = vadd.f32 %v896, %v954
        %v972 = vadd.f32 %v897, %v958
        %v973 = vadd.f32 %v898, %v954
        %v974 = vadd.f32 %v899, %v958
        %v975 = vadd.f32 %v900, %v954
        %v976 = vadd.f32 %v901, %v958
        %v977 = vadd.f32 %v902, %v954
        %v978 = vadd.f32 %v903, %v958
        %v979 = vadd.f32 %v904, %v954
        %v980 = vadd.f32 %v905, %v958
        %v981 = vadd.f32 %v906, %v954
        %v982 = vadd.f32 %v907, %v958
        %v983 = vadd.f32 %v908, %v954
        %v984 = vadd.f32 %v909, %v958
        %v985 = vadd.f32 %v910, %v954
        %v986 = vadd.f32 %v911, %v958
        %v987 = vadd.f32 %v912, %v954
        %v988 = vadd.f32 %v913, %v958
        %v989 = vadd.f32 %v914, %v954
        %v990 = vadd.f32 %v915, %v958
        %v991 = vadd.f32 %v916, %v954
        %v992 = vadd.f32 %v917, %v958
        %v993 = vadd.f32 %v918, %v954
        %v994 = vadd.f32 %v919, %v958
        %v995 = vadd.f32 %v920, %v954
        %v996 = vadd.f32 %v921, %v958
        %v997 = vadd.f32 %v922, %v954
        %v998 = vadd.f32 %v923, %v958
        %v999 = vadd.f32 %v924, %v954
        %v1000 = vadd.f32 %v925, %v958
        %v1001 = vadd.f32 %v926, %v954
        %v1002 = vadd.f32 %v927, %v958
        %v1003 = vadd.f32 %v928, %v954
        %v1004 = vadd.f32 %v929, %v958
        %v1005 = vadd.f32 %v930, %v954
        %v1006 = vadd.f32 %v931, %v958
        %v1007 = vadd.f32 %v932, %v954
        %v1008 = vadd.f32 %v933, %v958
        %v1009 = vadd.f32 %v934, %v954
        %v1010 = vadd.f32 %v935, %v958
        %v1011 = vadd.f32 %v936, %v954
        %v1012 = vadd.f32 %v937, %v958
        %v1013 = vadd.f32 %v938, %v954
        %v1014 = vadd.f32 %v939, %v958
        %v1015 = vadd.f32 %v940, %v954
        %v1016 = vadd.f32 %v941, %v958
        %v1017 = vadd.f32 %v942, %v954
        %v1018 = vadd.f32 %v943, %v958
        %v1019 = vadd.f32 %v944, %v954
        %v1020 = vadd.f32 %v945, %v958
        %v1021 = vadd.f32 %v946, %v954
        %v1022 = vadd.f32 %v947, %v958
        %v1023 = vadd.f32 %v948, %v954
        %v1024 = vadd.f32 %v949, %v958
        %v1025 = vld [vmem:[#allocation8] sm:$0xff]
        %v1026 = vld [vmem:[#allocation8 + $0x8] sm:$0xff]
        %v1027 = vld [vmem:[#allocation8 + $0x10] sm:$0xff]
        %v1028 = vld [vmem:[#allocation8 + $0x18] sm:$0xff]
        %v1029 = vld [vmem:[#allocation8 + $0x20] sm:$0xff]
        %v1030 = vld [vmem:[#allocation8 + $0x28] sm:$0xff]
        %v1031 = vld [vmem:[#allocation8 + $0x30] sm:$0xff]
        %v1032 = vld [vmem:[#allocation8 + $0x38] sm:$0xff]
        %v1033 = vld [vmem:[#allocation8 + $0x40] sm:$0xff]
        %v1034 = vld [vmem:[#allocation8 + $0x48] sm:$0xff]
        %v1035 = vld [vmem:[#allocation8 + $0x50] sm:$0xff]
        %v1036 = vld [vmem:[#allocation8 + $0x58] sm:$0xff]
        %v1037 = vld [vmem:[#allocation8 + $0x60] sm:$0xff]
        %v1038 = vld [vmem:[#allocation8 + $0x68] sm:$0xff]
        %v1039 = vld [vmem:[#allocation8 + $0x70] sm:$0xff]
        %v1040 = vld [vmem:[#allocation8 + $0x78] sm:$0xff]
        %v1041 = vld [vmem:[#allocation8 + $0x80] sm:$0xff]
        %v1042 = vld [vmem:[#allocation8 + $0x88] sm:$0xff]
        %v1043 = vld [vmem:[#allocation8 + $0x90] sm:$0xff]
        %v1044 = vld [vmem:[#allocation8 + $0x98] sm:$0xff]
        %v1045 = vld [vmem:[#allocation8 + $0xa0] sm:$0xff]
        %v1046 = vld [vmem:[#allocation8 + $0xa8] sm:$0xff]
        %v1047 = vld [vmem:[#allocation8 + $0xb0] sm:$0xff]
        %v1048 = vld [vmem:[#allocation8 + $0xb8] sm:$0xff]
        %v1049 = vld [vmem:[#allocation8 + $0xc0] sm:$0xff]
        %v1050 = vld [vmem:[#allocation8 + $0xc8] sm:$0xff]
        %v1051 = vld [vmem:[#allocation8 + $0xd0] sm:$0xff]
        %v1052 = vld [vmem:[#allocation8 + $0xd8] sm:$0xff]
        %v1053 = vld [vmem:[#allocation8 + $0xe0] sm:$0xff]
        %v1054 = vld [vmem:[#allocation8 + $0xe8] sm:$0xff]
        %v1055 = vld [vmem:[#allocation8 + $0xf0] sm:$0xff]
        %v1056 = vld [vmem:[#allocation8 + $0xf8] sm:$0xff]
        %v1057 = vld [vmem:[#allocation8 + $0x100] sm:$0xff]
        %v1058 = vld [vmem:[#allocation8 + $0x108] sm:$0xff]
        %v1059 = vld [vmem:[#allocation8 + $0x110] sm:$0xff]
        %v1060 = vld [vmem:[#allocation8 + $0x118] sm:$0xff]
        %v1061 = vld [vmem:[#allocation8 + $0x120] sm:$0xff]
        %v1062 = vld [vmem:[#allocation8 + $0x128] sm:$0xff]
        %v1063 = vld [vmem:[#allocation8 + $0x130] sm:$0xff]
        %v1064 = vld [vmem:[#allocation8 + $0x138] sm:$0xff]
        %v1065 = vld [vmem:[#allocation8 + $0x140] sm:$0xff]
        %v1066 = vld [vmem:[#allocation8 + $0x148] sm:$0xff]
        %v1067 = vld [vmem:[#allocation8 + $0x150] sm:$0xff]
        %v1068 = vld [vmem:[#allocation8 + $0x158] sm:$0xff]
        %v1069 = vld [vmem:[#allocation8 + $0x160] sm:$0xff]
        %v1070 = vld [vmem:[#allocation8 + $0x168] sm:$0xff]
        %v1071 = vld [vmem:[#allocation8 + $0x170] sm:$0xff]
        %v1072 = vld [vmem:[#allocation8 + $0x178] sm:$0xff]
        %v1073 = vld [vmem:[#allocation8 + $0x180] sm:$0xff]
        %v1074 = vld [vmem:[#allocation8 + $0x188] sm:$0xff]
        %v1075 = vld [vmem:[#allocation8 + $0x190] sm:$0xff]
        %v1076 = vld [vmem:[#allocation8 + $0x198] sm:$0xff]
        %v1077 = vld [vmem:[#allocation8 + $0x1a0] sm:$0xff]
        %v1078 = vld [vmem:[#allocation8 + $0x1a8] sm:$0xff]
        %v1079 = vld [vmem:[#allocation8 + $0x1b0] sm:$0xff]
        %v1080 = vld [vmem:[#allocation8 + $0x1b8] sm:$0xff]
        %v1081 = vld [vmem:[#allocation8 + $0x1c0] sm:$0xff]
        %v1082 = vld [vmem:[#allocation8 + $0x1c8] sm:$0xff]
        %v1083 = vld [vmem:[#allocation8 + $0x1d0] sm:$0xff]
        %v1084 = vld [vmem:[#allocation8 + $0x1d8] sm:$0xff]
        %v1085 = vld [vmem:[#allocation8 + $0x1e0] sm:$0xff]
        %v1086 = vld [vmem:[#allocation8 + $0x1e8] sm:$0xff]
        %v1087 = vld [vmem:[#allocation8 + $0x1f0] sm:$0xff]
        %v1088 = vld [vmem:[#allocation8 + $0x1f8] sm:$0xff]
        %v1089 = vld [vmem:[#allocation8 + $0x200] sm:$0xff]
        %v1090 = vld [vmem:[#allocation8 + $0x208] sm:$0xff]
        %v1091 = vld [vmem:[#allocation8 + $0x210] sm:$0xff]
        %v1092 = vld [vmem:[#allocation8 + $0x218] sm:$0xff]
        %v1093 = vld [vmem:[#allocation8 + $0x220] sm:$0xff]
        %v1094 = vld [vmem:[#allocation8 + $0x228] sm:$0xff]
        %v1095 = vld [vmem:[#allocation8 + $0x230] sm:$0xff]
        %v1096 = vld [vmem:[#allocation8 + $0x238] sm:$0xff]
        %v1097 = vld [vmem:[#allocation8 + $0x240] sm:$0xff]
        %v1098 = vld [vmem:[#allocation8 + $0x248] sm:$0xff]
        %v1099 = vld [vmem:[#allocation8 + $0x250] sm:$0xff]
        %v1100 = vld [vmem:[#allocation8 + $0x258] sm:$0xff]
        %v1101 = vld [vmem:[#allocation8 + $0x260] sm:$0xff]
        %v1102 = vld [vmem:[#allocation8 + $0x268] sm:$0xff]
        %v1103 = vld [vmem:[#allocation8 + $0x270] sm:$0xff]
        %v1104 = vld [vmem:[#allocation8 + $0x278] sm:$0xff]
        %v1105 = vld [vmem:[#allocation8 + $0x280] sm:$0xff]
        %v1106 = vld [vmem:[#allocation8 + $0x288] sm:$0xff]
        %v1107 = vld [vmem:[#allocation8 + $0x290] sm:$0xff]
        %v1108 = vld [vmem:[#allocation8 + $0x298] sm:$0xff]
        %v1109 = vld [vmem:[#allocation8 + $0x2a0] sm:$0xff]
        %v1110 = vld [vmem:[#allocation8 + $0x2a8] sm:$0xff]
        %v1111 = vld [vmem:[#allocation8 + $0x2b0] sm:$0xff]
        %v1112 = vld [vmem:[#allocation8 + $0x2b8] sm:$0xff]
        %v1113 = vld [vmem:[#allocation8 + $0x2c0] sm:$0xff]
        %v1114 = vld [vmem:[#allocation8 + $0x2c8] sm:$0xff]
        %v1115 = vld [vmem:[#allocation8 + $0x2d0] sm:$0xff]
        %v1116 = vld [vmem:[#allocation8 + $0x2d8] sm:$0xff]
        %v1117 = vld [vmem:[#allocation8 + $0x2e0] sm:$0xff]
        %v1118 = vld [vmem:[#allocation8 + $0x2e8] sm:$0xff]
        %v1119 = vld [vmem:[#allocation8 + $0x2f0] sm:$0xff]
        %v1120 = vld [vmem:[#allocation8 + $0x2f8] sm:$0xff]
        %v1121 = vld [vmem:[#allocation8 + $0x300] sm:$0xff]
        %v1122 = vld [vmem:[#allocation8 + $0x308] sm:$0xff]
        %v1123 = vld [vmem:[#allocation8 + $0x310] sm:$0xff]
        %v1124 = vld [vmem:[#allocation8 + $0x318] sm:$0xff]
        %v1125 = vld [vmem:[#allocation8 + $0x320] sm:$0xff]
        %v1126 = vld [vmem:[#allocation8 + $0x328] sm:$0xff]
        %v1127 = vld [vmem:[#allocation8 + $0x330] sm:$0xff]
        %v1128 = vld [vmem:[#allocation8 + $0x338] sm:$0xff]
        %v1129 = vld [vmem:[#allocation8 + $0x340] sm:$0xff]
        %v1130 = vld [vmem:[#allocation8 + $0x348] sm:$0xff]
        %v1131 = vld [vmem:[#allocation8 + $0x350] sm:$0xff]
        %v1132 = vld [vmem:[#allocation8 + $0x358] sm:$0xff]
        %v1133 = vld [vmem:[#allocation8 + $0x360] sm:$0xff]
        %v1134 = vld [vmem:[#allocation8 + $0x368] sm:$0xff]
        %v1135 = vld [vmem:[#allocation8 + $0x370] sm:$0xff]
        %v1136 = vld [vmem:[#allocation8 + $0x378] sm:$0xff]
        %v1137 = vld [vmem:[#allocation8 + $0x380] sm:$0xff]
        %v1138 = vld [vmem:[#allocation8 + $0x388] sm:$0xff]
        %v1139 = vld [vmem:[#allocation8 + $0x390] sm:$0xff]
        %v1140 = vld [vmem:[#allocation8 + $0x398] sm:$0xff]
        %v1141 = vld [vmem:[#allocation8 + $0x3a0] sm:$0xff]
        %v1142 = vld [vmem:[#allocation8 + $0x3a8] sm:$0xff]
        %v1143 = vld [vmem:[#allocation8 + $0x3b0] sm:$0xff]
        %v1144 = vld [vmem:[#allocation8 + $0x3b8] sm:$0xff]
        %v1145 = vld [vmem:[#allocation8 + $0x3c0] sm:$0xff]
        %v1146 = vld [vmem:[#allocation8 + $0x3c8] sm:$0xff]
        %v1147 = vld [vmem:[#allocation8 + $0x3d0] sm:$0xff]
        %v1148 = vld [vmem:[#allocation8 + $0x3d8] sm:$0xff]
        %v1149 = vld [vmem:[#allocation8 + $0x3e0] sm:$0xff]
        %v1150 = vld [vmem:[#allocation8 + $0x3e8] sm:$0xff]
        %v1151 = vld [vmem:[#allocation8 + $0x3f0] sm:$0xff]
        %v1152 = vld [vmem:[#allocation8 + $0x3f8] sm:$0xff]
        %v1153 = vld [vmem:[#allocation8 + $0x400] sm:$0xff]
        %v1154 = vld [vmem:[#allocation8 + $0x408] sm:$0xff]
        %v1155 = vld [vmem:[#allocation8 + $0x410] sm:$0xff]
        %v1156 = vld [vmem:[#allocation8 + $0x418] sm:$0xff]
        %v1157 = vld [vmem:[#allocation8 + $0x420] sm:$0xff]
        %v1158 = vld [vmem:[#allocation8 + $0x428] sm:$0xff]
        %v1159 = vld [vmem:[#allocation8 + $0x430] sm:$0xff]
        %v1160 = vld [vmem:[#allocation8 + $0x438] sm:$0xff]
        %v1161 = vld [vmem:[#allocation8 + $0x440] sm:$0xff]
        %v1162 = vld [vmem:[#allocation8 + $0x448] sm:$0xff]
        %v1163 = vld [vmem:[#allocation8 + $0x450] sm:$0xff]
        %v1164 = vld [vmem:[#allocation8 + $0x458] sm:$0xff]
        %v1165 = vld [vmem:[#allocation8 + $0x460] sm:$0xff]
        %v1166 = vld [vmem:[#allocation8 + $0x468] sm:$0xff]
        %v1167 = vld [vmem:[#allocation8 + $0x470] sm:$0xff]
        %v1168 = vld [vmem:[#allocation8 + $0x478] sm:$0xff]
        %v1169 = vld [vmem:[#allocation8 + $0x480] sm:$0xff]
        %v1170 = vld [vmem:[#allocation8 + $0x488] sm:$0xff]
        %v1171 = vld [vmem:[#allocation8 + $0x490] sm:$0xff]
        %v1172 = vld [vmem:[#allocation8 + $0x498] sm:$0xff]
        %v1173 = vld [vmem:[#allocation8 + $0x4a0] sm:$0xff]
        %v1174 = vld [vmem:[#allocation8 + $0x4a8] sm:$0xff]
        %v1175 = vld [vmem:[#allocation8 + $0x4b0] sm:$0xff]
        %v1176 = vld [vmem:[#allocation8 + $0x4b8] sm:$0xff]
        %v1177 = vld [vmem:[#allocation8 + $0x4c0] sm:$0xff]
        %v1178 = vld [vmem:[#allocation8 + $0x4c8] sm:$0xff]
        %v1179 = vld [vmem:[#allocation8 + $0x4d0] sm:$0xff]
        %v1180 = vld [vmem:[#allocation8 + $0x4d8] sm:$0xff]
        %v1181 = vld [vmem:[#allocation8 + $0x4e0] sm:$0xff]
        %v1182 = vld [vmem:[#allocation8 + $0x4e8] sm:$0xff]
        %v1183 = vld [vmem:[#allocation8 + $0x4f0] sm:$0xff]
        %v1184 = vld [vmem:[#allocation8 + $0x4f8] sm:$0xff]
        %v1185 = vld [vmem:[#allocation8 + $0x500] sm:$0xff]
        %v1186 = vld [vmem:[#allocation8 + $0x508] sm:$0xff]
        %v1187 = vld [vmem:[#allocation8 + $0x510] sm:$0xff]
        %v1188 = vld [vmem:[#allocation8 + $0x518] sm:$0xff]
        %v1189 = vld [vmem:[#allocation8 + $0x520] sm:$0xff]
        %v1190 = vld [vmem:[#allocation8 + $0x528] sm:$0xff]
        %v1191 = vld [vmem:[#allocation8 + $0x530] sm:$0xff]
        %v1192 = vld [vmem:[#allocation8 + $0x538] sm:$0xff]
        %v1193 = vld [vmem:[#allocation8 + $0x540] sm:$0xff]
        %v1194 = vld [vmem:[#allocation8 + $0x548] sm:$0xff]
        %v1195 = vld [vmem:[#allocation8 + $0x550] sm:$0xff]
        %v1196 = vld [vmem:[#allocation8 + $0x558] sm:$0xff]
        %v1197 = vld [vmem:[#allocation8 + $0x560] sm:$0xff]
        %v1198 = vld [vmem:[#allocation8 + $0x568] sm:$0xff]
        %v1199 = vld [vmem:[#allocation8 + $0x570] sm:$0xff]
        %v1200 = vld [vmem:[#allocation8 + $0x578] sm:$0xff]
        %v1201 = vld [vmem:[#allocation8 + $0x580] sm:$0xff]
        %v1202 = vld [vmem:[#allocation8 + $0x588] sm:$0xff]
        %v1203 = vld [vmem:[#allocation8 + $0x590] sm:$0xff]
        %v1204 = vld [vmem:[#allocation8 + $0x598] sm:$0xff]
        %v1205 = vld [vmem:[#allocation8 + $0x5a0] sm:$0xff]
        %v1206 = vld [vmem:[#allocation8 + $0x5a8] sm:$0xff]
        %v1207 = vld [vmem:[#allocation8 + $0x5b0] sm:$0xff]
        %v1208 = vld [vmem:[#allocation8 + $0x5b8] sm:$0xff]
        %v1209 = vld [vmem:[#allocation8 + $0x5c0] sm:$0xff]
        %v1210 = vld [vmem:[#allocation8 + $0x5c8] sm:$0xff]
        %v1211 = vld [vmem:[#allocation8 + $0x5d0] sm:$0xff]
        %v1212 = vld [vmem:[#allocation8 + $0x5d8] sm:$0xff]
        %v1213 = vld [vmem:[#allocation8 + $0x5e0] sm:$0xff]
        %v1214 = vld [vmem:[#allocation8 + $0x5e8] sm:$0xff]
        %v1215 = vld [vmem:[#allocation8 + $0x5f0] sm:$0xff]
        %v1216 = vld [vmem:[#allocation8 + $0x5f8] sm:$0xff]
        %1217 = vmatprep.subr.mxu0 %v1116
        %1218 = vmatpush1.msra.mxu0 %v1115
        %1219 = vmatprep.subr.mxu0 %v1110
        %1220 = vmatpush1.msra.mxu0 %v1109
        %1221 = vmatprep.subr.mxu0 %v1104
        %1222 = vmatpush1.msra.mxu0 %v1103
        %1223 = vmatprep.subr.mxu0 %v1098
        %1224 = vmatpush1.msra.mxu0 %v1097
        %1225 = vmatprep.subr.mxu0 %v1092
        %1226 = vmatpush1.msra.mxu0 %v1091
        %1227 = vmatprep.subr.mxu0 %v1086
        %1228 = vmatpush1.msra.mxu0 %v1085
        %1229 = vmatprep.subr.mxu0 %v1080
        %1230 = vmatpush1.msra.mxu0 %v1079
        %1231 = vmatprep.subr.mxu0 %v1074
        %1232 = vmatpush1.msra.mxu0 %v1073
        %1233 = vmatprep.subr.mxu0 %v1068
        %1234 = vmatpush1.msra.mxu0 %v1067
        %1235 = vmatprep.subr.mxu0 %v1062
        %1236 = vmatpush1.msra.mxu0 %v1061
        %1237 = vmatprep.subr.mxu0 %v1056
        %1238 = vmatpush1.msra.mxu0 %v1055
        %1239 = vmatprep.subr.mxu0 %v1050
        %1240 = vmatpush1.msra.mxu0 %v1049
        %1241 = vmatprep.subr.mxu0 %v1044
        %1242 = vmatpush1.msra.mxu0 %v1043
        %1243 = vmatprep.subr.mxu0 %v1038
        %1244 = vmatpush1.msra.mxu0 %v1037
        %1245 = vmatprep.subr.mxu0 %v1032
        %1246 = vmatpush1.msra.mxu0 %v1031
        %1247 = vmatprep.subr.mxu0 %v1026
        %1248 = vmatpush1.msra.mxu0 %v1025
        %1249 = vmatprep.subr.mxu0 %v1212
        %1250 = vmatpush2.msra.mxu0 %v1211
        %1251 = vmatprep.subr.mxu0 %v1206
        %1252 = vmatpush2.msra.mxu0 %v1205
        %1253 = vmatprep.subr.mxu0 %v1200
        %1254 = vmatpush2.msra.mxu0 %v1199
        %1255 = vmatprep.subr.mxu0 %v1194
        %1256 = vmatpush2.msra.mxu0 %v1193
        %1257 = vmatprep.subr.mxu0 %v1188
        %1258 = vmatpush2.msra.mxu0 %v1187
        %1259 = vmatprep.subr.mxu0 %v1182
        %1260 = vmatpush2.msra.mxu0 %v1181
        %1261 = vmatprep.subr.mxu0 %v1176
        %1262 = vmatpush2.msra.mxu0 %v1175
        %1263 = vmatprep.subr.mxu0 %v1170
        %1264 = vmatpush2.msra.mxu0 %v1169
        %1265 = vmatprep.subr.mxu0 %v1164
        %1266 = vmatpush2.msra.mxu0 %v1163
        %1267 = vmatprep.subr.mxu0 %v1158
        %1268 = vmatpush2.msra.mxu0 %v1157
        %1269 = vmatprep.subr.mxu0 %v1152
        %1270 = vmatpush2.msra.mxu0 %v1151
        %1271 = vmatprep.subr.mxu0 %v1146
        %1272 = vmatpush2.msra.mxu0 %v1145
        %1273 = vmatprep.subr.mxu0 %v1140
        %1274 = vmatpush2.msra.mxu0 %v1139
        %1275 = vmatprep.subr.mxu0 %v1134
        %1276 = vmatpush2.msra.mxu0 %v1133
        %1277 = vmatprep.subr.mxu0 %v1128
        %1278 = vmatpush2.msra.mxu0 %v1127
        %1279 = vmatprep.subr.mxu0 %v1122
        %1280 = vmatpush2.msra.mxu0 %v1121
        %1281 = vmatprep.mubr.f32.mxu0 %v962
        %1282 = vmatmul.mubr.f32.gmra.mxu0 %v961
        %v1283 = vpop.f32.mrf.mxu0
        %v1284 = vadd.f32 0.0, %v1283
        %v1285 = vpop.f32.mrf.mxu0
        %v1286 = vadd.f32 0.0, %v1285
        %1287 = vmatprep.mubr.f32.mxu0 %v964
        %1288 = vmatmul.mubr.f32.gmra.mxu0 %v963
        %v1289 = vpop.f32.mrf.mxu0
        %v1290 = vadd.f32 0.0, %v1289
        %v1291 = vpop.f32.mrf.mxu0
        %v1292 = vadd.f32 0.0, %v1291
        %1293 = vmatprep.mubr.f32.mxu0 %v966
        %1294 = vmatmul.mubr.f32.gmra.mxu0 %v965
        %v1295 = vpop.f32.mrf.mxu0
        %v1296 = vadd.f32 0.0, %v1295
        %v1297 = vpop.f32.mrf.mxu0
        %v1298 = vadd.f32 0.0, %v1297
        %1299 = vmatprep.mubr.f32.mxu0 %v968
        %1300 = vmatmul.mubr.f32.gmra.mxu0 %v967
        %v1301 = vpop.f32.mrf.mxu0
        %v1302 = vadd.f32 0.0, %v1301
        %v1303 = vpop.f32.mrf.mxu0
        %v1304 = vadd.f32 0.0, %v1303
        %1305 = vmatprep.mubr.f32.mxu0 %v970
        %1306 = vmatmul.mubr.f32.gmra.mxu0 %v969
        %v1307 = vpop.f32.mrf.mxu0
        %v1308 = vadd.f32 0.0, %v1307
        %v1309 = vpop.f32.mrf.mxu0
        %v1310 = vadd.f32 0.0, %v1309
        %1311 = vmatprep.mubr.f32.mxu0 %v972
        %1312 = vmatmul.mubr.f32.gmra.mxu0 %v971
        %v1313 = vpop.f32.mrf.mxu0
        %v1314 = vadd.f32 0.0, %v1313
        %v1315 = vpop.f32.mrf.mxu0
        %v1316 = vadd.f32 0.0, %v1315
        %1317 = vmatprep.mubr.f32.mxu0 %v974
        %1318 = vmatmul.mubr.f32.gmra.mxu0 %v973
        %v1319 = vpop.f32.mrf.mxu0
        %v1320 = vadd.f32 0.0, %v1319
        %v1321 = vpop.f32.mrf.mxu0
        %v1322 = vadd.f32 0.0, %v1321
        %1323 = vmatprep.mubr.f32.mxu0 %v976
        %1324 = vmatmul.mubr.f32.gmra.mxu0 %v975
        %v1325 = vpop.f32.mrf.mxu0
        %v1326 = vadd.f32 0.0, %v1325
        %v1327 = vpop.f32.mrf.mxu0
        %v1328 = vadd.f32 0.0, %v1327
        %1329 = vmatprep.mubr.f32.mxu0 %v978
        %1330 = vmatmul.mubr.f32.gmra.mxu0 %v977
        %v1331 = vpop.f32.mrf.mxu0
        %v1332 = vadd.f32 0.0, %v1331
        %v1333 = vpop.f32.mrf.mxu0
        %v1334 = vadd.f32 0.0, %v1333
        %1335 = vmatprep.mubr.f32.mxu0 %v980
        %1336 = vmatmul.mubr.f32.gmra.mxu0 %v979
        %v1337 = vpop.f32.mrf.mxu0
        %v1338 = vadd.f32 0.0, %v1337
        %v1339 = vpop.f32.mrf.mxu0
        %v1340 = vadd.f32 0.0, %v1339
        %1341 = vmatprep.mubr.f32.mxu0 %v982
        %1342 = vmatmul.mubr.f32.gmra.mxu0 %v981
        %v1343 = vpop.f32.mrf.mxu0
        %v1344 = vadd.f32 0.0, %v1343
        %v1345 = vpop.f32.mrf.mxu0
        %v1346 = vadd.f32 0.0, %v1345
        %1347 = vmatprep.mubr.f32.mxu0 %v984
        %1348 = vmatmul.mubr.f32.gmra.mxu0 %v983
        %v1349 = vpop.f32.mrf.mxu0
        %v1350 = vadd.f32 0.0, %v1349
        %v1351 = vpop.f32.mrf.mxu0
        %v1352 = vadd.f32 0.0, %v1351
        %1353 = vmatprep.mubr.f32.mxu0 %v986
        %1354 = vmatmul.mubr.f32.gmra.mxu0 %v985
        %v1355 = vpop.f32.mrf.mxu0
        %v1356 = vadd.f32 0.0, %v1355
        %v1357 = vpop.f32.mrf.mxu0
        %v1358 = vadd.f32 0.0, %v1357
        %1359 = vmatprep.mubr.f32.mxu0 %v988
        %1360 = vmatmul.mubr.f32.gmra.mxu0 %v987
        %v1361 = vpop.f32.mrf.mxu0
        %v1362 = vadd.f32 0.0, %v1361
        %v1363 = vpop.f32.mrf.mxu0
        %v1364 = vadd.f32 0.0, %v1363
        %1365 = vmatprep.mubr.f32.mxu0 %v990
        %1366 = vmatmul.mubr.f32.gmra.mxu0 %v989
        %v1367 = vpop.f32.mrf.mxu0
        %v1368 = vadd.f32 0.0, %v1367
        %v1369 = vpop.f32.mrf.mxu0
        %v1370 = vadd.f32 0.0, %v1369
        %1371 = vmatprep.mubr.f32.mxu0 %v992
        %1372 = vmatmul.mubr.f32.gmra.mxu0 %v991
        %v1373 = vpop.f32.mrf.mxu0
        %v1374 = vadd.f32 0.0, %v1373
        %v1375 = vpop.f32.mrf.mxu0
        %v1376 = vadd.f32 0.0, %v1375
        %1377 = vmatprep.mubr.f32.mxu0 %v994
        %1378 = vmatmul.mubr.f32.gmra.mxu0 %v993
        %v1379 = vpop.f32.mrf.mxu0
        %v1380 = vadd.f32 0.0, %v1379
        %v1381 = vpop.f32.mrf.mxu0
        %v1382 = vadd.f32 0.0, %v1381
        %1383 = vmatprep.mubr.f32.mxu0 %v996
        %1384 = vmatmul.mubr.f32.gmra.mxu0 %v995
        %v1385 = vpop.f32.mrf.mxu0
        %v1386 = vadd.f32 0.0, %v1385
        %v1387 = vpop.f32.mrf.mxu0
        %v1388 = vadd.f32 0.0, %v1387
        %1389 = vmatprep.mubr.f32.mxu0 %v998
        %1390 = vmatmul.mubr.f32.gmra.mxu0 %v997
        %v1391 = vpop.f32.mrf.mxu0
        %v1392 = vadd.f32 0.0, %v1391
        %v1393 = vpop.f32.mrf.mxu0
        %v1394 = vadd.f32 0.0, %v1393
        %1395 = vmatprep.mubr.f32.mxu0 %v1000
        %1396 = vmatmul.mubr.f32.gmra.mxu0 %v999
        %v1397 = vpop.f32.mrf.mxu0
        %v1398 = vadd.f32 0.0, %v1397
        %v1399 = vpop.f32.mrf.mxu0
        %v1400 = vadd.f32 0.0, %v1399
        %1401 = vmatprep.mubr.f32.mxu0 %v1002
        %1402 = vmatmul.mubr.f32.gmra.mxu0 %v1001
        %v1403 = vpop.f32.mrf.mxu0
        %v1404 = vadd.f32 0.0, %v1403
        %v1405 = vpop.f32.mrf.mxu0
        %v1406 = vadd.f32 0.0, %v1405
        %1407 = vmatprep.mubr.f32.mxu0 %v1004
        %1408 = vmatmul.mubr.f32.gmra.mxu0 %v1003
        %v1409 = vpop.f32.mrf.mxu0
        %v1410 = vadd.f32 0.0, %v1409
        %v1411 = vpop.f32.mrf.mxu0
        %v1412 = vadd.f32 0.0, %v1411
        %1413 = vmatprep.mubr.f32.mxu0 %v1006
        %1414 = vmatmul.mubr.f32.gmra.mxu0 %v1005
        %v1415 = vpop.f32.mrf.mxu0
        %v1416 = vadd.f32 0.0, %v1415
        %v1417 = vpop.f32.mrf.mxu0
        %v1418 = vadd.f32 0.0, %v1417
        %1419 = vmatprep.mubr.f32.mxu0 %v1008
        %1420 = vmatmul.mubr.f32.gmra.mxu0 %v1007
        %v1421 = vpop.f32.mrf.mxu0
        %v1422 = vadd.f32 0.0, %v1421
        %v1423 = vpop.f32.mrf.mxu0
        %v1424 = vadd.f32 0.0, %v1423
        %1425 = vmatprep.mubr.f32.mxu0 %v1010
        %1426 = vmatmul.mubr.f32.gmra.mxu0 %v1009
        %v1427 = vpop.f32.mrf.mxu0
        %v1428 = vadd.f32 0.0, %v1427
        %v1429 = vpop.f32.mrf.mxu0
        %v1430 = vadd.f32 0.0, %v1429
        %1431 = vmatprep.mubr.f32.mxu0 %v1012
        %1432 = vmatmul.mubr.f32.gmra.mxu0 %v1011
        %v1433 = vpop.f32.mrf.mxu0
        %v1434 = vadd.f32 0.0, %v1433
        %v1435 = vpop.f32.mrf.mxu0
        %v1436 = vadd.f32 0.0, %v1435
        %1437 = vmatprep.mubr.f32.mxu0 %v1014
        %1438 = vmatmul.mubr.f32.gmra.mxu0 %v1013
        %v1439 = vpop.f32.mrf.mxu0
        %v1440 = vadd.f32 0.0, %v1439
        %v1441 = vpop.f32.mrf.mxu0
        %v1442 = vadd.f32 0.0, %v1441
        %1443 = vmatprep.mubr.f32.mxu0 %v1016
        %1444 = vmatmul.mubr.f32.gmra.mxu0 %v1015
        %v1445 = vpop.f32.mrf.mxu0
        %v1446 = vadd.f32 0.0, %v1445
        %v1447 = vpop.f32.mrf.mxu0
        %v1448 = vadd.f32 0.0, %v1447
        %1449 = vmatprep.mubr.f32.mxu0 %v1018
        %1450 = vmatmul.mubr.f32.gmra.mxu0 %v1017
        %v1451 = vpop.f32.mrf.mxu0
        %v1452 = vadd.f32 0.0, %v1451
        %v1453 = vpop.f32.mrf.mxu0
        %v1454 = vadd.f32 0.0, %v1453
        %1455 = vmatprep.mubr.f32.mxu0 %v1020
        %1456 = vmatmul.mubr.f32.gmra.mxu0 %v1019
        %v1457 = vpop.f32.mrf.mxu0
        %v1458 = vadd.f32 0.0, %v1457
        %v1459 = vpop.f32.mrf.mxu0
        %v1460 = vadd.f32 0.0, %v1459
        %1461 = vmatprep.mubr.f32.mxu0 %v1022
        %1462 = vmatmul.mubr.f32.gmra.mxu0 %v1021
        %v1463 = vpop.f32.mrf.mxu0
        %v1464 = vadd.f32 0.0, %v1463
        %v1465 = vpop.f32.mrf.mxu0
        %v1466 = vadd.f32 0.0, %v1465
        %1467 = vmatprep.mubr.f32.mxu0 %v1024
        %1468 = vmatmul.mubr.f32.gmra.mxu0 %v1023
        %v1469 = vpop.f32.mrf.mxu0
        %v1470 = vadd.f32 0.0, %v1469
        %v1471 = vpop.f32.mrf.mxu0
        %v1472 = vadd.f32 0.0, %v1471
        %1473 = vdwg.mxu0
        %1474 = vmatprep.subr.mxu0 %v1118
        %1475 = vmatpush1.msra.mxu0 %v1117
        %1476 = vmatprep.subr.mxu0 %v1112
        %1477 = vmatpush1.msra.mxu0 %v1111
        %1478 = vmatprep.subr.mxu0 %v1106
        %1479 = vmatpush1.msra.mxu0 %v1105
        %1480 = vmatprep.subr.mxu0 %v1100
        %1481 = vmatpush1.msra.mxu0 %v1099
        %1482 = vmatprep.subr.mxu0 %v1094
        %1483 = vmatpush1.msra.mxu0 %v1093
        %1484 = vmatprep.subr.mxu0 %v1088
        %1485 = vmatpush1.msra.mxu0 %v1087
        %1486 = vmatprep.subr.mxu0 %v1082
        %1487 = vmatpush1.msra.mxu0 %v1081
        %1488 = vmatprep.subr.mxu0 %v1076
        %1489 = vmatpush1.msra.mxu0 %v1075
        %1490 = vmatprep.subr.mxu0 %v1070
        %1491 = vmatpush1.msra.mxu0 %v1069
        %1492 = vmatprep.subr.mxu0 %v1064
        %1493 = vmatpush1.msra.mxu0 %v1063
        %1494 = vmatprep.subr.mxu0 %v1058
        %1495 = vmatpush1.msra.mxu0 %v1057
        %1496 = vmatprep.subr.mxu0 %v1052
        %1497 = vmatpush1.msra.mxu0 %v1051
        %1498 = vmatprep.subr.mxu0 %v1046
        %1499 = vmatpush1.msra.mxu0 %v1045
        %1500 = vmatprep.subr.mxu0 %v1040
        %1501 = vmatpush1.msra.mxu0 %v1039
        %1502 = vmatprep.subr.mxu0 %v1034
        %1503 = vmatpush1.msra.mxu0 %v1033
        %1504 = vmatprep.subr.mxu0 %v1028
        %1505 = vmatpush1.msra.mxu0 %v1027
        %1506 = vmatprep.subr.mxu0 %v1214
        %1507 = vmatpush2.msra.mxu0 %v1213
        %1508 = vmatprep.subr.mxu0 %v1208
        %1509 = vmatpush2.msra.mxu0 %v1207
        %1510 = vmatprep.subr.mxu0 %v1202
        %1511 = vmatpush2.msra.mxu0 %v1201
        %1512 = vmatprep.subr.mxu0 %v1196
        %1513 = vmatpush2.msra.mxu0 %v1195
        %1514 = vmatprep.subr.mxu0 %v1190
        %1515 = vmatpush2.msra.mxu0 %v1189
        %1516 = vmatprep.subr.mxu0 %v1184
        %1517 = vmatpush2.msra.mxu0 %v1183
        %1518 = vmatprep.subr.mxu0 %v1178
        %1519 = vmatpush2.msra.mxu0 %v1177
        %1520 = vmatprep.subr.mxu0 %v1172
        %1521 = vmatpush2.msra.mxu0 %v1171
        %1522 = vmatprep.subr.mxu0 %v1166
        %1523 = vmatpush2.msra.mxu0 %v1165
        %1524 = vmatprep.subr.mxu0 %v1160
        %1525 = vmatpush2.msra.mxu0 %v1159
        %1526 = vmatprep.subr.mxu0 %v1154
        %1527 = vmatpush2.msra.mxu0 %v1153
        %1528 = vmatprep.subr.mxu0 %v1148
        %1529 = vmatpush2.msra.mxu0 %v1147
        %1530 = vmatprep.subr.mxu0 %v1142
        %1531 = vmatpush2.msra.mxu0 %v1141
        %1532 = vmatprep.subr.mxu0 %v1136
        %1533 = vmatpush2.msra.mxu0 %v1135
        %1534 = vmatprep.subr.mxu0 %v1130
        %1535 = vmatpush2.msra.mxu0 %v1129
        %1536 = vmatprep.subr.mxu0 %v1124
        %1537 = vmatpush2.msra.mxu0 %v1123
        %1538 = vmatprep.mubr.f32.mxu0 %v962
        %1539 = vmatmul.mubr.f32.gmra.mxu0 %v961
        %v1540 = vpop.f32.mrf.mxu0
        %v1541 = vadd.f32 0.0, %v1540
        %v1542 = vpop.f32.mrf.mxu0
        %v1543 = vadd.f32 0.0, %v1542
        %1544 = vmatprep.mubr.f32.mxu0 %v964
        %1545 = vmatmul.mubr.f32.gmra.mxu0 %v963
        %v1546 = vpop.f32.mrf.mxu0
        %v1547 = vadd.f32 0.0, %v1546
        %v1548 = vpop.f32.mrf.mxu0
        %v1549 = vadd.f32 0.0, %v1548
        %1550 = vmatprep.mubr.f32.mxu0 %v966
        %1551 = vmatmul.mubr.f32.gmra.mxu0 %v965
        %v1552 = vpop.f32.mrf.mxu0
        %v1553 = vadd.f32 0.0, %v1552
        %v1554 = vpop.f32.mrf.mxu0
        %v1555 = vadd.f32 0.0, %v1554
        %1556 = vmatprep.mubr.f32.mxu0 %v968
        %1557 = vmatmul.mubr.f32.gmra.mxu0 %v967
        %v1558 = vpop.f32.mrf.mxu0
        %v1559 = vadd.f32 0.0, %v1558
        %v1560 = vpop.f32.mrf.mxu0
        %v1561 = vadd.f32 0.0, %v1560
        %1562 = vmatprep.mubr.f32.mxu0 %v970
        %1563 = vmatmul.mubr.f32.gmra.mxu0 %v969
        %v1564 = vpop.f32.mrf.mxu0
        %v1565 = vadd.f32 0.0, %v1564
        %v1566 = vpop.f32.mrf.mxu0
        %v1567 = vadd.f32 0.0, %v1566
        %1568 = vmatprep.mubr.f32.mxu0 %v972
        %1569 = vmatmul.mubr.f32.gmra.mxu0 %v971
        %v1570 = vpop.f32.mrf.mxu0
        %v1571 = vadd.f32 0.0, %v1570
        %v1572 = vpop.f32.mrf.mxu0
        %v1573 = vadd.f32 0.0, %v1572
        %1574 = vmatprep.mubr.f32.mxu0 %v974
        %1575 = vmatmul.mubr.f32.gmra.mxu0 %v973
        %v1576 = vpop.f32.mrf.mxu0
        %v1577 = vadd.f32 0.0, %v1576
        %v1578 = vpop.f32.mrf.mxu0
        %v1579 = vadd.f32 0.0, %v1578
        %1580 = vmatprep.mubr.f32.mxu0 %v976
        %1581 = vmatmul.mubr.f32.gmra.mxu0 %v975
        %v1582 = vpop.f32.mrf.mxu0
        %v1583 = vadd.f32 0.0, %v1582
        %v1584 = vpop.f32.mrf.mxu0
        %v1585 = vadd.f32 0.0, %v1584
        %1586 = vmatprep.mubr.f32.mxu0 %v978
        %1587 = vmatmul.mubr.f32.gmra.mxu0 %v977
        %v1588 = vpop.f32.mrf.mxu0
        %v1589 = vadd.f32 0.0, %v1588
        %v1590 = vpop.f32.mrf.mxu0
        %v1591 = vadd.f32 0.0, %v1590
        %1592 = vmatprep.mubr.f32.mxu0 %v980
        %1593 = vmatmul.mubr.f32.gmra.mxu0 %v979
        %v1594 = vpop.f32.mrf.mxu0
        %v1595 = vadd.f32 0.0, %v1594
        %v1596 = vpop.f32.mrf.mxu0
        %v1597 = vadd.f32 0.0, %v1596
        %1598 = vmatprep.mubr.f32.mxu0 %v982
        %1599 = vmatmul.mubr.f32.gmra.mxu0 %v981
        %v1600 = vpop.f32.mrf.mxu0
        %v1601 = vadd.f32 0.0, %v1600
        %v1602 = vpop.f32.mrf.mxu0
        %v1603 = vadd.f32 0.0, %v1602
        %1604 = vmatprep.mubr.f32.mxu0 %v984
        %1605 = vmatmul.mubr.f32.gmra.mxu0 %v983
        %v1606 = vpop.f32.mrf.mxu0
        %v1607 = vadd.f32 0.0, %v1606
        %v1608 = vpop.f32.mrf.mxu0
        %v1609 = vadd.f32 0.0, %v1608
        %1610 = vmatprep.mubr.f32.mxu0 %v986
        %1611 = vmatmul.mubr.f32.gmra.mxu0 %v985
        %v1612 = vpop.f32.mrf.mxu0
        %v1613 = vadd.f32 0.0, %v1612
        %v1614 = vpop.f32.mrf.mxu0
        %v1615 = vadd.f32 0.0, %v1614
        %1616 = vmatprep.mubr.f32.mxu0 %v988
        %1617 = vmatmul.mubr.f32.gmra.mxu0 %v987
        %v1618 = vpop.f32.mrf.mxu0
        %v1619 = vadd.f32 0.0, %v1618
        %v1620 = vpop.f32.mrf.mxu0
        %v1621 = vadd.f32 0.0, %v1620
        %1622 = vmatprep.mubr.f32.mxu0 %v990
        %1623 = vmatmul.mubr.f32.gmra.mxu0 %v989
        %v1624 = vpop.f32.mrf.mxu0
        %v1625 = vadd.f32 0.0, %v1624
        %v1626 = vpop.f32.mrf.mxu0
        %v1627 = vadd.f32 0.0, %v1626
        %1628 = vmatprep.mubr.f32.mxu0 %v992
        %1629 = vmatmul.mubr.f32.gmra.mxu0 %v991
        %v1630 = vpop.f32.mrf.mxu0
        %v1631 = vadd.f32 0.0, %v1630
        %v1632 = vpop.f32.mrf.mxu0
        %v1633 = vadd.f32 0.0, %v1632
        %1634 = vmatprep.mubr.f32.mxu0 %v994
        %1635 = vmatmul.mubr.f32.gmra.mxu0 %v993
        %v1636 = vpop.f32.mrf.mxu0
        %v1637 = vadd.f32 0.0, %v1636
        %v1638 = vpop.f32.mrf.mxu0
        %v1639 = vadd.f32 0.0, %v1638
        %1640 = vmatprep.mubr.f32.mxu0 %v996
        %1641 = vmatmul.mubr.f32.gmra.mxu0 %v995
        %v1642 = vpop.f32.mrf.mxu0
        %v1643 = vadd.f32 0.0, %v1642
        %v1644 = vpop.f32.mrf.mxu0
        %v1645 = vadd.f32 0.0, %v1644
        %1646 = vmatprep.mubr.f32.mxu0 %v998
        %1647 = vmatmul.mubr.f32.gmra.mxu0 %v997
        %v1648 = vpop.f32.mrf.mxu0
        %v1649 = vadd.f32 0.0, %v1648
        %v1650 = vpop.f32.mrf.mxu0
        %v1651 = vadd.f32 0.0, %v1650
        %1652 = vmatprep.mubr.f32.mxu0 %v1000
        %1653 = vmatmul.mubr.f32.gmra.mxu0 %v999
        %v1654 = vpop.f32.mrf.mxu0
        %v1655 = vadd.f32 0.0, %v1654
        %v1656 = vpop.f32.mrf.mxu0
        %v1657 = vadd.f32 0.0, %v1656
        %1658 = vmatprep.mubr.f32.mxu0 %v1002
        %1659 = vmatmul.mubr.f32.gmra.mxu0 %v1001
        %v1660 = vpop.f32.mrf.mxu0
        %v1661 = vadd.f32 0.0, %v1660
        %v1662 = vpop.f32.mrf.mxu0
        %v1663 = vadd.f32 0.0, %v1662
        %1664 = vmatprep.mubr.f32.mxu0 %v1004
        %1665 = vmatmul.mubr.f32.gmra.mxu0 %v1003
        %v1666 = vpop.f32.mrf.mxu0
        %v1667 = vadd.f32 0.0, %v1666
        %v1668 = vpop.f32.mrf.mxu0
        %v1669 = vadd.f32 0.0, %v1668
        %1670 = vmatprep.mubr.f32.mxu0 %v1006
        %1671 = vmatmul.mubr.f32.gmra.mxu0 %v1005
        %v1672 = vpop.f32.mrf.mxu0
        %v1673 = vadd.f32 0.0, %v1672
        %v1674 = vpop.f32.mrf.mxu0
        %v1675 = vadd.f32 0.0, %v1674
        %1676 = vmatprep.mubr.f32.mxu0 %v1008
        %1677 = vmatmul.mubr.f32.gmra.mxu0 %v1007
        %v1678 = vpop.f32.mrf.mxu0
        %v1679 = vadd.f32 0.0, %v1678
        %v1680 = vpop.f32.mrf.mxu0
        %v1681 = vadd.f32 0.0, %v1680
        %1682 = vmatprep.mubr.f32.mxu0 %v1010
        %1683 = vmatmul.mubr.f32.gmra.mxu0 %v1009
        %v1684 = vpop.f32.mrf.mxu0
        %v1685 = vadd.f32 0.0, %v1684
        %v1686 = vpop.f32.mrf.mxu0
        %v1687 = vadd.f32 0.0, %v1686
        %1688 = vmatprep.mubr.f32.mxu0 %v1012
        %1689 = vmatmul.mubr.f32.gmra.mxu0 %v1011
        %v1690 = vpop.f32.mrf.mxu0
        %v1691 = vadd.f32 0.0, %v1690
        %v1692 = vpop.f32.mrf.mxu0
        %v1693 = vadd.f32 0.0, %v1692
        %1694 = vmatprep.mubr.f32.mxu0 %v1014
        %1695 = vmatmul.mubr.f32.gmra.mxu0 %v1013
        %v1696 = vpop.f32.mrf.mxu0
        %v1697 = vadd.f32 0.0, %v1696
        %v1698 = vpop.f32.mrf.mxu0
        %v1699 = vadd.f32 0.0, %v1698
        %1700 = vmatprep.mubr.f32.mxu0 %v1016
        %1701 = vmatmul.mubr.f32.gmra.mxu0 %v1015
        %v1702 = vpop.f32.mrf.mxu0
        %v1703 = vadd.f32 0.0, %v1702
        %v1704 = vpop.f32.mrf.mxu0
        %v1705 = vadd.f32 0.0, %v1704
        %1706 = vmatprep.mubr.f32.mxu0 %v1018
        %1707 = vmatmul.mubr.f32.gmra.mxu0 %v1017
        %v1708 = vpop.f32.mrf.mxu0
        %v1709 = vadd.f32 0.0, %v1708
        %v1710 = vpop.f32.mrf.mxu0
        %v1711 = vadd.f32 0.0, %v1710
        %1712 = vmatprep.mubr.f32.mxu0 %v1020
        %1713 = vmatmul.mubr.f32.gmra.mxu0 %v1019
        %v1714 = vpop.f32.mrf.mxu0
        %v1715 = vadd.f32 0.0, %v1714
        %v1716 = vpop.f32.mrf.mxu0
        %v1717 = vadd.f32 0.0, %v1716
        %1718 = vmatprep.mubr.f32.mxu0 %v1022
        %1719 = vmatmul.mubr.f32.gmra.mxu0 %v1021
        %v1720 = vpop.f32.mrf.mxu0
        %v1721 = vadd.f32 0.0, %v1720
        %v1722 = vpop.f32.mrf.mxu0
        %v1723 = vadd.f32 0.0, %v1722
        %1724 = vmatprep.mubr.f32.mxu0 %v1024
        %1725 = vmatmul.mubr.f32.gmra.mxu0 %v1023
        %v1726 = vpop.f32.mrf.mxu0
        %v1727 = vadd.f32 0.0, %v1726
        %v1728 = vpop.f32.mrf.mxu0
        %v1729 = vadd.f32 0.0, %v1728
        %1730 = vdwg.mxu0
        %1731 = vmatprep.subr.mxu0 %v1120
        %1732 = vmatpush1.msra.mxu0 %v1119
        %1733 = vmatprep.subr.mxu0 %v1114
        %1734 = vmatpush1.msra.mxu0 %v1113
        %1735 = vmatprep.subr.mxu0 %v1108
        %1736 = vmatpush1.msra.mxu0 %v1107
        %1737 = vmatprep.subr.mxu0 %v1102
        %1738 = vmatpush1.msra.mxu0 %v1101
        %1739 = vmatprep.subr.mxu0 %v1096
        %1740 = vmatpush1.msra.mxu0 %v1095
        %1741 = vmatprep.subr.mxu0 %v1090
        %1742 = vmatpush1.msra.mxu0 %v1089
        %1743 = vmatprep.subr.mxu0 %v1084
        %1744 = vmatpush1.msra.mxu0 %v1083
        %1745 = vmatprep.subr.mxu0 %v1078
        %1746 = vmatpush1.msra.mxu0 %v1077
        %1747 = vmatprep.subr.mxu0 %v1072
        %1748 = vmatpush1.msra.mxu0 %v1071
        %1749 = vmatprep.subr.mxu0 %v1066
        %1750 = vmatpush1.msra.mxu0 %v1065
        %1751 = vmatprep.subr.mxu0 %v1060
        %1752 = vmatpush1.msra.mxu0 %v1059
        %1753 = vmatprep.subr.mxu0 %v1054
        %1754 = vmatpush1.msra.mxu0 %v1053
        %1755 = vmatprep.subr.mxu0 %v1048
        %1756 = vmatpush1.msra.mxu0 %v1047
        %1757 = vmatprep.subr.mxu0 %v1042
        %1758 = vmatpush1.msra.mxu0 %v1041
        %1759 = vmatprep.subr.mxu0 %v1036
        %1760 = vmatpush1.msra.mxu0 %v1035
        %1761 = vmatprep.subr.mxu0 %v1030
        %1762 = vmatpush1.msra.mxu0 %v1029
        %1763 = vmatprep.subr.mxu0 %v1216
        %1764 = vmatpush2.msra.mxu0 %v1215
        %1765 = vmatprep.subr.mxu0 %v1210
        %1766 = vmatpush2.msra.mxu0 %v1209
        %1767 = vmatprep.subr.mxu0 %v1204
        %1768 = vmatpush2.msra.mxu0 %v1203
        %1769 = vmatprep.subr.mxu0 %v1198
        %1770 = vmatpush2.msra.mxu0 %v1197
        %1771 = vmatprep.subr.mxu0 %v1192
        %1772 = vmatpush2.msra.mxu0 %v1191
        %1773 = vmatprep.subr.mxu0 %v1186
        %1774 = vmatpush2.msra.mxu0 %v1185
        %1775 = vmatprep.subr.mxu0 %v1180
        %1776 = vmatpush2.msra.mxu0 %v1179
        %1777 = vmatprep.subr.mxu0 %v1174
        %1778 = vmatpush2.msra.mxu0 %v1173
        %1779 = vmatprep.subr.mxu0 %v1168
        %1780 = vmatpush2.msra.mxu0 %v1167
        %1781 = vmatprep.subr.mxu0 %v1162
        %1782 = vmatpush2.msra.mxu0 %v1161
        %1783 = vmatprep.subr.mxu0 %v1156
        %1784 = vmatpush2.msra.mxu0 %v1155
        %1785 = vmatprep.subr.mxu0 %v1150
        %1786 = vmatpush2.msra.mxu0 %v1149
        %1787 = vmatprep.subr.mxu0 %v1144
        %1788 = vmatpush2.msra.mxu0 %v1143
        %1789 = vmatprep.subr.mxu0 %v1138
        %1790 = vmatpush2.msra.mxu0 %v1137
        %1791 = vmatprep.subr.mxu0 %v1132
        %1792 = vmatpush2.msra.mxu0 %v1131
        %1793 = vmatprep.subr.mxu0 %v1126
        %1794 = vmatpush2.msra.mxu0 %v1125
        %1795 = vmatprep.mubr.f32.mxu0 %v962
        %1796 = vmatmul.mubr.f32.gmra.mxu0 %v961
        %v1797 = vpop.f32.mrf.mxu0
        %v1798 = vadd.f32 0.0, %v1797
        %v1799 = vpop.f32.mrf.mxu0
        %v1800 = vadd.f32 0.0, %v1799
        %1801 = vmatprep.mubr.f32.mxu0 %v964
        %1802 = vmatmul.mubr.f32.gmra.mxu0 %v963
        %v1803 = vpop.f32.mrf.mxu0
        %v1804 = vadd.f32 0.0, %v1803
        %v1805 = vpop.f32.mrf.mxu0
        %v1806 = vadd.f32 0.0, %v1805
        %1807 = vmatprep.mubr.f32.mxu0 %v966
        %1808 = vmatmul.mubr.f32.gmra.mxu0 %v965
        %v1809 = vpop.f32.mrf.mxu0
        %v1810 = vadd.f32 0.0, %v1809
        %v1811 = vpop.f32.mrf.mxu0
        %v1812 = vadd.f32 0.0, %v1811
        %1813 = vmatprep.mubr.f32.mxu0 %v968
        %1814 = vmatmul.mubr.f32.gmra.mxu0 %v967
        %v1815 = vpop.f32.mrf.mxu0
        %v1816 = vadd.f32 0.0, %v1815
        %v1817 = vpop.f32.mrf.mxu0
        %v1818 = vadd.f32 0.0, %v1817
        %1819 = vmatprep.mubr.f32.mxu0 %v970
        %1820 = vmatmul.mubr.f32.gmra.mxu0 %v969
        %v1821 = vpop.f32.mrf.mxu0
        %v1822 = vadd.f32 0.0, %v1821
        %v1823 = vpop.f32.mrf.mxu0
        %v1824 = vadd.f32 0.0, %v1823
        %1825 = vmatprep.mubr.f32.mxu0 %v972
        %1826 = vmatmul.mubr.f32.gmra.mxu0 %v971
        %v1827 = vpop.f32.mrf.mxu0
        %v1828 = vadd.f32 0.0, %v1827
        %v1829 = vpop.f32.mrf.mxu0
        %v1830 = vadd.f32 0.0, %v1829
        %1831 = vmatprep.mubr.f32.mxu0 %v974
        %1832 = vmatmul.mubr.f32.gmra.mxu0 %v973
        %v1833 = vpop.f32.mrf.mxu0
        %v1834 = vadd.f32 0.0, %v1833
        %v1835 = vpop.f32.mrf.mxu0
        %v1836 = vadd.f32 0.0, %v1835
        %1837 = vmatprep.mubr.f32.mxu0 %v976
        %1838 = vmatmul.mubr.f32.gmra.mxu0 %v975
        %v1839 = vpop.f32.mrf.mxu0
        %v1840 = vadd.f32 0.0, %v1839
        %v1841 = vpop.f32.mrf.mxu0
        %v1842 = vadd.f32 0.0, %v1841
        %1843 = vmatprep.mubr.f32.mxu0 %v978
        %1844 = vmatmul.mubr.f32.gmra.mxu0 %v977
        %v1845 = vpop.f32.mrf.mxu0
        %v1846 = vadd.f32 0.0, %v1845
        %v1847 = vpop.f32.mrf.mxu0
        %v1848 = vadd.f32 0.0, %v1847
        %1849 = vmatprep.mubr.f32.mxu0 %v980
        %1850 = vmatmul.mubr.f32.gmra.mxu0 %v979
        %v1851 = vpop.f32.mrf.mxu0
        %v1852 = vadd.f32 0.0, %v1851
        %v1853 = vpop.f32.mrf.mxu0
        %v1854 = vadd.f32 0.0, %v1853
        %1855 = vmatprep.mubr.f32.mxu0 %v982
        %1856 = vmatmul.mubr.f32.gmra.mxu0 %v981
        %v1857 = vpop.f32.mrf.mxu0
        %v1858 = vadd.f32 0.0, %v1857
        %v1859 = vpop.f32.mrf.mxu0
        %v1860 = vadd.f32 0.0, %v1859
        %1861 = vmatprep.mubr.f32.mxu0 %v984
        %1862 = vmatmul.mubr.f32.gmra.mxu0 %v983
        %v1863 = vpop.f32.mrf.mxu0
        %v1864 = vadd.f32 0.0, %v1863
        %v1865 = vpop.f32.mrf.mxu0
        %v1866 = vadd.f32 0.0, %v1865
        %1867 = vmatprep.mubr.f32.mxu0 %v986
        %1868 = vmatmul.mubr.f32.gmra.mxu0 %v985
        %v1869 = vpop.f32.mrf.mxu0
        %v1870 = vadd.f32 0.0, %v1869
        %v1871 = vpop.f32.mrf.mxu0
        %v1872 = vadd.f32 0.0, %v1871
        %1873 = vmatprep.mubr.f32.mxu0 %v988
        %1874 = vmatmul.mubr.f32.gmra.mxu0 %v987
        %v1875 = vpop.f32.mrf.mxu0
        %v1876 = vadd.f32 0.0, %v1875
        %v1877 = vpop.f32.mrf.mxu0
        %v1878 = vadd.f32 0.0, %v1877
        %1879 = vmatprep.mubr.f32.mxu0 %v990
        %1880 = vmatmul.mubr.f32.gmra.mxu0 %v989
        %v1881 = vpop.f32.mrf.mxu0
        %v1882 = vadd.f32 0.0, %v1881
        %v1883 = vpop.f32.mrf.mxu0
        %v1884 = vadd.f32 0.0, %v1883
        %1885 = vmatprep.mubr.f32.mxu0 %v992
        %1886 = vmatmul.mubr.f32.gmra.mxu0 %v991
        %v1887 = vpop.f32.mrf.mxu0
        %v1888 = vadd.f32 0.0, %v1887
        %v1889 = vpop.f32.mrf.mxu0
        %v1890 = vadd.f32 0.0, %v1889
        %1891 = vmatprep.mubr.f32.mxu0 %v994
        %1892 = vmatmul.mubr.f32.gmra.mxu0 %v993
        %v1893 = vpop.f32.mrf.mxu0
        %v1894 = vadd.f32 0.0, %v1893
        %v1895 = vpop.f32.mrf.mxu0
        %v1896 = vadd.f32 0.0, %v1895
        %1897 = vmatprep.mubr.f32.mxu0 %v996
        %1898 = vmatmul.mubr.f32.gmra.mxu0 %v995
        %v1899 = vpop.f32.mrf.mxu0
        %v1900 = vadd.f32 0.0, %v1899
        %v1901 = vpop.f32.mrf.mxu0
        %v1902 = vadd.f32 0.0, %v1901
        %1903 = vmatprep.mubr.f32.mxu0 %v998
        %1904 = vmatmul.mubr.f32.gmra.mxu0 %v997
        %v1905 = vpop.f32.mrf.mxu0
        %v1906 = vadd.f32 0.0, %v1905
        %v1907 = vpop.f32.mrf.mxu0
        %v1908 = vadd.f32 0.0, %v1907
        %1909 = vmatprep.mubr.f32.mxu0 %v1000
        %1910 = vmatmul.mubr.f32.gmra.mxu0 %v999
        %v1911 = vpop.f32.mrf.mxu0
        %v1912 = vadd.f32 0.0, %v1911
        %v1913 = vpop.f32.mrf.mxu0
        %v1914 = vadd.f32 0.0, %v1913
        %1915 = vmatprep.mubr.f32.mxu0 %v1002
        %1916 = vmatmul.mubr.f32.gmra.mxu0 %v1001
        %v1917 = vpop.f32.mrf.mxu0
        %v1918 = vadd.f32 0.0, %v1917
        %v1919 = vpop.f32.mrf.mxu0
        %v1920 = vadd.f32 0.0, %v1919
        %1921 = vmatprep.mubr.f32.mxu0 %v1004
        %1922 = vmatmul.mubr.f32.gmra.mxu0 %v1003
        %v1923 = vpop.f32.mrf.mxu0
        %v1924 = vadd.f32 0.0, %v1923
        %v1925 = vpop.f32.mrf.mxu0
        %v1926 = vadd.f32 0.0, %v1925
        %1927 = vmatprep.mubr.f32.mxu0 %v1006
        %1928 = vmatmul.mubr.f32.gmra.mxu0 %v1005
        %v1929 = vpop.f32.mrf.mxu0
        %v1930 = vadd.f32 0.0, %v1929
        %v1931 = vpop.f32.mrf.mxu0
        %v1932 = vadd.f32 0.0, %v1931
        %1933 = vmatprep.mubr.f32.mxu0 %v1008
        %1934 = vmatmul.mubr.f32.gmra.mxu0 %v1007
        %v1935 = vpop.f32.mrf.mxu0
        %v1936 = vadd.f32 0.0, %v1935
        %v1937 = vpop.f32.mrf.mxu0
        %v1938 = vadd.f32 0.0, %v1937
        %1939 = vmatprep.mubr.f32.mxu0 %v1010
        %1940 = vmatmul.mubr.f32.gmra.mxu0 %v1009
        %v1941 = vpop.f32.mrf.mxu0
        %v1942 = vadd.f32 0.0, %v1941
        %v1943 = vpop.f32.mrf.mxu0
        %v1944 = vadd.f32 0.0, %v1943
        %1945 = vmatprep.mubr.f32.mxu0 %v1012
        %1946 = vmatmul.mubr.f32.gmra.mxu0 %v1011
        %v1947 = vpop.f32.mrf.mxu0
        %v1948 = vadd.f32 0.0, %v1947
        %v1949 = vpop.f32.mrf.mxu0
        %v1950 = vadd.f32 0.0, %v1949
        %1951 = vmatprep.mubr.f32.mxu0 %v1014
        %1952 = vmatmul.mubr.f32.gmra.mxu0 %v1013
        %v1953 = vpop.f32.mrf.mxu0
        %v1954 = vadd.f32 0.0, %v1953
        %v1955 = vpop.f32.mrf.mxu0
        %v1956 = vadd.f32 0.0, %v1955
        %1957 = vmatprep.mubr.f32.mxu0 %v1016
        %1958 = vmatmul.mubr.f32.gmra.mxu0 %v1015
        %v1959 = vpop.f32.mrf.mxu0
        %v1960 = vadd.f32 0.0, %v1959
        %v1961 = vpop.f32.mrf.mxu0
        %v1962 = vadd.f32 0.0, %v1961
        %1963 = vmatprep.mubr.f32.mxu0 %v1018
        %1964 = vmatmul.mubr.f32.gmra.mxu0 %v1017
        %v1965 = vpop.f32.mrf.mxu0
        %v1966 = vadd.f32 0.0, %v1965
        %v1967 = vpop.f32.mrf.mxu0
        %v1968 = vadd.f32 0.0, %v1967
        %1969 = vmatprep.mubr.f32.mxu0 %v1020
        %1970 = vmatmul.mubr.f32.gmra.mxu0 %v1019
        %v1971 = vpop.f32.mrf.mxu0
        %v1972 = vadd.f32 0.0, %v1971
        %v1973 = vpop.f32.mrf.mxu0
        %v1974 = vadd.f32 0.0, %v1973
        %1975 = vmatprep.mubr.f32.mxu0 %v1022
        %1976 = vmatmul.mubr.f32.gmra.mxu0 %v1021
        %v1977 = vpop.f32.mrf.mxu0
        %v1978 = vadd.f32 0.0, %v1977
        %v1979 = vpop.f32.mrf.mxu0
        %v1980 = vadd.f32 0.0, %v1979
        %1981 = vmatprep.mubr.f32.mxu0 %v1024
        %1982 = vmatmul.mubr.f32.gmra.mxu0 %v1023
        %v1983 = vpop.f32.mrf.mxu0
        %v1984 = vadd.f32 0.0, %v1983
        %v1985 = vpop.f32.mrf.mxu0
        %v1986 = vadd.f32 0.0, %v1985
        %1987 = vdwg.mxu0
        %1988 = vst [vmem:[%s291] sm:$0xff] %v1284
        %1989 = vst [vmem:[%s291 + $0x8] sm:$0xff] %v1286
        %1990 = vst [vmem:[%s291 + $0x10] sm:$0xff] %v1541
        %1991 = vst [vmem:[%s291 + $0x18] sm:$0xff] %v1543
        %1992 = vst [vmem:[%s291 + $0x20] sm:$0xff] %v1798
        %1993 = vst [vmem:[%s291 + $0x28] sm:$0xff] %v1800
        %1994 = vst [vmem:[%s291 + $0x30] sm:$0xff] %v1290
        %1995 = vst [vmem:[%s291 + $0x38] sm:$0xff] %v1292
        %1996 = vst [vmem:[%s291 + $0x40] sm:$0xff] %v1547
        %1997 = vst [vmem:[%s291 + $0x48] sm:$0xff] %v1549
        %1998 = vst [vmem:[%s291 + $0x50] sm:$0xff] %v1804
        %1999 = vst [vmem:[%s291 + $0x58] sm:$0xff] %v1806
        %2000 = vst [vmem:[%s291 + $0x60] sm:$0xff] %v1296
        %2001 = vst [vmem:[%s291 + $0x68] sm:$0xff] %v1298
        %2002 = vst [vmem:[%s291 + $0x70] sm:$0xff] %v1553
        %2003 = vst [vmem:[%s291 + $0x78] sm:$0xff] %v1555
        %2004 = vst [vmem:[%s291 + $0x80] sm:$0xff] %v1810
        %2005 = vst [vmem:[%s291 + $0x88] sm:$0xff] %v1812
        %2006 = vst [vmem:[%s291 + $0x90] sm:$0xff] %v1302
        %2007 = vst [vmem:[%s291 + $0x98] sm:$0xff] %v1304
        %2008 = vst [vmem:[%s291 + $0xa0] sm:$0xff] %v1559
        %2009 = vst [vmem:[%s291 + $0xa8] sm:$0xff] %v1561
        %2010 = vst [vmem:[%s291 + $0xb0] sm:$0xff] %v1816
        %2011 = vst [vmem:[%s291 + $0xb8] sm:$0xff] %v1818
        %2012 = vst [vmem:[%s291 + $0xc0] sm:$0xff] %v1308
        %2013 = vst [vmem:[%s291 + $0xc8] sm:$0xff] %v1310
        %2014 = vst [vmem:[%s291 + $0xd0] sm:$0xff] %v1565
        %2015 = vst [vmem:[%s291 + $0xd8] sm:$0xff] %v1567
        %2016 = vst [vmem:[%s291 + $0xe0] sm:$0xff] %v1822
        %2017 = vst [vmem:[%s291 + $0xe8] sm:$0xff] %v1824
        %2018 = vst [vmem:[%s291 + $0xf0] sm:$0xff] %v1314
        %2019 = vst [vmem:[%s291 + $0xf8] sm:$0xff] %v1316
        %2020 = vst [vmem:[%s291 + $0x100] sm:$0xff] %v1571
        %2021 = vst [vmem:[%s291 + $0x108] sm:$0xff] %v1573
        %2022 = vst [vmem:[%s291 + $0x110] sm:$0xff] %v1828
        %2023 = vst [vmem:[%s291 + $0x118] sm:$0xff] %v1830
        %2024 = vst [vmem:[%s291 + $0x120] sm:$0xff] %v1320
        %2025 = vst [vmem:[%s291 + $0x128] sm:$0xff] %v1322
        %2026 = vst [vmem:[%s291 + $0x130] sm:$0xff] %v1577
        %2027 = vst [vmem:[%s291 + $0x138] sm:$0xff] %v1579
        %2028 = vst [vmem:[%s291 + $0x140] sm:$0xff] %v1834
        %2029 = vst [vmem:[%s291 + $0x148] sm:$0xff] %v1836
        %2030 = vst [vmem:[%s291 + $0x150] sm:$0xff] %v1326
        %2031 = vst [vmem:[%s291 + $0x158] sm:$0xff] %v1328
        %2032 = vst [vmem:[%s291 + $0x160] sm:$0xff] %v1583
        %2033 = vst [vmem:[%s291 + $0x168] sm:$0xff] %v1585
        %2034 = vst [vmem:[%s291 + $0x170] sm:$0xff] %v1840
        %2035 = vst [vmem:[%s291 + $0x178] sm:$0xff] %v1842
        %2036 = vst [vmem:[%s291 + $0x180] sm:$0xff] %v1332
        %2037 = vst [vmem:[%s291 + $0x188] sm:$0xff] %v1334
        %2038 = vst [vmem:[%s291 + $0x190] sm:$0xff] %v1589
        %2039 = vst [vmem:[%s291 + $0x198] sm:$0xff] %v1591
        %2040 = vst [vmem:[%s291 + $0x1a0] sm:$0xff] %v1846
        %2041 = vst [vmem:[%s291 + $0x1a8] sm:$0xff] %v1848
        %2042 = vst [vmem:[%s291 + $0x1b0] sm:$0xff] %v1338
        %2043 = vst [vmem:[%s291 + $0x1b8] sm:$0xff] %v1340
        %2044 = vst [vmem:[%s291 + $0x1c0] sm:$0xff] %v1595
        %2045 = vst [vmem:[%s291 + $0x1c8] sm:$0xff] %v1597
        %2046 = vst [vmem:[%s291 + $0x1d0] sm:$0xff] %v1852
        %2047 = vst [vmem:[%s291 + $0x1d8] sm:$0xff] %v1854
        %2048 = vst [vmem:[%s291 + $0x1e0] sm:$0xff] %v1344
        %2049 = vst [vmem:[%s291 + $0x1e8] sm:$0xff] %v1346
        %2050 = vst [vmem:[%s291 + $0x1f0] sm:$0xff] %v1601
        %2051 = vst [vmem:[%s291 + $0x1f8] sm:$0xff] %v1603
        %2052 = vst [vmem:[%s291 + $0x200] sm:$0xff] %v1858
        %2053 = vst [vmem:[%s291 + $0x208] sm:$0xff] %v1860
        %2054 = vst [vmem:[%s291 + $0x210] sm:$0xff] %v1350
        %2055 = vst [vmem:[%s291 + $0x218] sm:$0xff] %v1352
        %2056 = vst [vmem:[%s291 + $0x220] sm:$0xff] %v1607
        %2057 = vst [vmem:[%s291 + $0x228] sm:$0xff] %v1609
        %2058 = vst [vmem:[%s291 + $0x230] sm:$0xff] %v1864
        %2059 = vst [vmem:[%s291 + $0x238] sm:$0xff] %v1866
        %2060 = vst [vmem:[%s291 + $0x240] sm:$0xff] %v1356
        %2061 = vst [vmem:[%s291 + $0x248] sm:$0xff] %v1358
        %2062 = vst [vmem:[%s291 + $0x250] sm:$0xff] %v1613
        %2063 = vst [vmem:[%s291 + $0x258] sm:$0xff] %v1615
        %2064 = vst [vmem:[%s291 + $0x260] sm:$0xff] %v1870
        %2065 = vst [vmem:[%s291 + $0x268] sm:$0xff] %v1872
        %2066 = vst [vmem:[%s291 + $0x270] sm:$0xff] %v1362
        %2067 = vst [vmem:[%s291 + $0x278] sm:$0xff] %v1364
        %2068 = vst [vmem:[%s291 + $0x280] sm:$0xff] %v1619
        %2069 = vst [vmem:[%s291 + $0x288] sm:$0xff] %v1621
        %2070 = vst [vmem:[%s291 + $0x290] sm:$0xff] %v1876
        %2071 = vst [vmem:[%s291 + $0x298] sm:$0xff] %v1878
        %2072 = vst [vmem:[%s291 + $0x2a0] sm:$0xff] %v1368
        %2073 = vst [vmem:[%s291 + $0x2a8] sm:$0xff] %v1370
        %2074 = vst [vmem:[%s291 + $0x2b0] sm:$0xff] %v1625
        %2075 = vst [vmem:[%s291 + $0x2b8] sm:$0xff] %v1627
        %2076 = vst [vmem:[%s291 + $0x2c0] sm:$0xff] %v1882
        %2077 = vst [vmem:[%s291 + $0x2c8] sm:$0xff] %v1884
        %2078 = vst [vmem:[%s291 + $0x2d0] sm:$0xff] %v1374
        %2079 = vst [vmem:[%s291 + $0x2d8] sm:$0xff] %v1376
        %2080 = vst [vmem:[%s291 + $0x2e0] sm:$0xff] %v1631
        %2081 = vst [vmem:[%s291 + $0x2e8] sm:$0xff] %v1633
        %2082 = vst [vmem:[%s291 + $0x2f0] sm:$0xff] %v1888
        %2083 = vst [vmem:[%s291 + $0x2f8] sm:$0xff] %v1890
        %2084 = vst [vmem:[%s291 + $0x300] sm:$0xff] %v1380
        %2085 = vst [vmem:[%s291 + $0x308] sm:$0xff] %v1382
        %2086 = vst [vmem:[%s291 + $0x310] sm:$0xff] %v1637
        %2087 = vst [vmem:[%s291 + $0x318] sm:$0xff] %v1639
        %2088 = vst [vmem:[%s291 + $0x320] sm:$0xff] %v1894
        %2089 = vst [vmem:[%s291 + $0x328] sm:$0xff] %v1896
        %2090 = vst [vmem:[%s291 + $0x330] sm:$0xff] %v1386
        %2091 = vst [vmem:[%s291 + $0x338] sm:$0xff] %v1388
        %2092 = vst [vmem:[%s291 + $0x340] sm:$0xff] %v1643
        %2093 = vst [vmem:[%s291 + $0x348] sm:$0xff] %v1645
        %2094 = vst [vmem:[%s291 + $0x350] sm:$0xff] %v1900
        %2095 = vst [vmem:[%s291 + $0x358] sm:$0xff] %v1902
        %2096 = vst [vmem:[%s291 + $0x360] sm:$0xff] %v1392
        %2097 = vst [vmem:[%s291 + $0x368] sm:$0xff] %v1394
        %2098 = vst [vmem:[%s291 + $0x370] sm:$0xff] %v1649
        %2099 = vst [vmem:[%s291 + $0x378] sm:$0xff] %v1651
        %2100 = vst [vmem:[%s291 + $0x380] sm:$0xff] %v1906
        %2101 = vst [vmem:[%s291 + $0x388] sm:$0xff] %v1908
        %2102 = vst [vmem:[%s291 + $0x390] sm:$0xff] %v1398
        %2103 = vst [vmem:[%s291 + $0x398] sm:$0xff] %v1400
        %2104 = vst [vmem:[%s291 + $0x3a0] sm:$0xff] %v1655
        %2105 = vst [vmem:[%s291 + $0x3a8] sm:$0xff] %v1657
        %2106 = vst [vmem:[%s291 + $0x3b0] sm:$0xff] %v1912
        %2107 = vst [vmem:[%s291 + $0x3b8] sm:$0xff] %v1914
        %2108 = vst [vmem:[%s291 + $0x3c0] sm:$0xff] %v1404
        %2109 = vst [vmem:[%s291 + $0x3c8] sm:$0xff] %v1406
        %2110 = vst [vmem:[%s291 + $0x3d0] sm:$0xff] %v1661
        %2111 = vst [vmem:[%s291 + $0x3d8] sm:$0xff] %v1663
        %2112 = vst [vmem:[%s291 + $0x3e0] sm:$0xff] %v1918
        %2113 = vst [vmem:[%s291 + $0x3e8] sm:$0xff] %v1920
        %2114 = vst [vmem:[%s291 + $0x3f0] sm:$0xff] %v1410
        %2115 = vst [vmem:[%s291 + $0x3f8] sm:$0xff] %v1412
        %2116 = vst [vmem:[%s291 + $0x400] sm:$0xff] %v1667
        %2117 = vst [vmem:[%s291 + $0x408] sm:$0xff] %v1669
        %2118 = vst [vmem:[%s291 + $0x410] sm:$0xff] %v1924
        %2119 = vst [vmem:[%s291 + $0x418] sm:$0xff] %v1926
        %2120 = vst [vmem:[%s291 + $0x420] sm:$0xff] %v1416
        %2121 = vst [vmem:[%s291 + $0x428] sm:$0xff] %v1418
        %2122 = vst [vmem:[%s291 + $0x430] sm:$0xff] %v1673
        %2123 = vst [vmem:[%s291 + $0x438] sm:$0xff] %v1675
        %2124 = vst [vmem:[%s291 + $0x440] sm:$0xff] %v1930
        %2125 = vst [vmem:[%s291 + $0x448] sm:$0xff] %v1932
        %2126 = vst [vmem:[%s291 + $0x450] sm:$0xff] %v1422
        %2127 = vst [vmem:[%s291 + $0x458] sm:$0xff] %v1424
        %2128 = vst [vmem:[%s291 + $0x460] sm:$0xff] %v1679
        %2129 = vst [vmem:[%s291 + $0x468] sm:$0xff] %v1681
        %2130 = vst [vmem:[%s291 + $0x470] sm:$0xff] %v1936
        %2131 = vst [vmem:[%s291 + $0x478] sm:$0xff] %v1938
        %2132 = vst [vmem:[%s291 + $0x480] sm:$0xff] %v1428
        %2133 = vst [vmem:[%s291 + $0x488] sm:$0xff] %v1430
        %2134 = vst [vmem:[%s291 + $0x490] sm:$0xff] %v1685
        %2135 = vst [vmem:[%s291 + $0x498] sm:$0xff] %v1687
        %2136 = vst [vmem:[%s291 + $0x4a0] sm:$0xff] %v1942
        %2137 = vst [vmem:[%s291 + $0x4a8] sm:$0xff] %v1944
        %2138 = vst [vmem:[%s291 + $0x4b0] sm:$0xff] %v1434
        %2139 = vst [vmem:[%s291 + $0x4b8] sm:$0xff] %v1436
        %2140 = vst [vmem:[%s291 + $0x4c0] sm:$0xff] %v1691
        %2141 = vst [vmem:[%s291 + $0x4c8] sm:$0xff] %v1693
        %2142 = vst [vmem:[%s291 + $0x4d0] sm:$0xff] %v1948
        %2143 = vst [vmem:[%s291 + $0x4d8] sm:$0xff] %v1950
        %2144 = vst [vmem:[%s291 + $0x4e0] sm:$0xff] %v1440
        %2145 = vst [vmem:[%s291 + $0x4e8] sm:$0xff] %v1442
        %2146 = vst [vmem:[%s291 + $0x4f0] sm:$0xff] %v1697
        %2147 = vst [vmem:[%s291 + $0x4f8] sm:$0xff] %v1699
        %2148 = vst [vmem:[%s291 + $0x500] sm:$0xff] %v1954
        %2149 = vst [vmem:[%s291 + $0x508] sm:$0xff] %v1956
        %2150 = vst [vmem:[%s291 + $0x510] sm:$0xff] %v1446
        %2151 = vst [vmem:[%s291 + $0x518] sm:$0xff] %v1448
        %2152 = vst [vmem:[%s291 + $0x520] sm:$0xff] %v1703
        %2153 = vst [vmem:[%s291 + $0x528] sm:$0xff] %v1705
        %2154 = vst [vmem:[%s291 + $0x530] sm:$0xff] %v1960
        %2155 = vst [vmem:[%s291 + $0x538] sm:$0xff] %v1962
        %2156 = vst [vmem:[%s291 + $0x540] sm:$0xff] %v1452
        %2157 = vst [vmem:[%s291 + $0x548] sm:$0xff] %v1454
        %2158 = vst [vmem:[%s291 + $0x550] sm:$0xff] %v1709
        %2159 = vst [vmem:[%s291 + $0x558] sm:$0xff] %v1711
        %2160 = vst [vmem:[%s291 + $0x560] sm:$0xff] %v1966
        %2161 = vst [vmem:[%s291 + $0x568] sm:$0xff] %v1968
        %2162 = vst [vmem:[%s291 + $0x570] sm:$0xff] %v1458
        %2163 = vst [vmem:[%s291 + $0x578] sm:$0xff] %v1460
        %2164 = vst [vmem:[%s291 + $0x580] sm:$0xff] %v1715
        %2165 = vst [vmem:[%s291 + $0x588] sm:$0xff] %v1717
        %2166 = vst [vmem:[%s291 + $0x590] sm:$0xff] %v1972
        %2167 = vst [vmem:[%s291 + $0x598] sm:$0xff] %v1974
        %2168 = vst [vmem:[%s291 + $0x5a0] sm:$0xff] %v1464
        %2169 = vst [vmem:[%s291 + $0x5a8] sm:$0xff] %v1466
        %2170 = vst [vmem:[%s291 + $0x5b0] sm:$0xff] %v1721
        %2171 = vst [vmem:[%s291 + $0x5b8] sm:$0xff] %v1723
        %2172 = vst [vmem:[%s291 + $0x5c0] sm:$0xff] %v1978
        %2173 = vst [vmem:[%s291 + $0x5c8] sm:$0xff] %v1980
        %2174 = vst [vmem:[%s291 + $0x5d0] sm:$0xff] %v1470
        %2175 = vst [vmem:[%s291 + $0x5d8] sm:$0xff] %v1472
        %2176 = vst [vmem:[%s291 + $0x5e0] sm:$0xff] %v1727
        %2177 = vst [vmem:[%s291 + $0x5e8] sm:$0xff] %v1729
        %2178 = vst [vmem:[%s291 + $0x5f0] sm:$0xff] %v1984
        %2179 = vst [vmem:[%s291 + $0x5f8] sm:$0xff] %v1986
        %s2180 = sand.u32 %s150, 1
        %s2181 = scalar_lea.sflag [#allocation4], %s2180
        %s2182 = sand.u32 %s150, 1
        %s2183 = smul.addr %s2182, 1536
        %s2184 = scalar_lea.vmem [#allocation10], %s2183
        // Predicated region
        $region53: #{tpu_custom_call.1} parent=35 // pred_check
          %p2185 = pneg %p160
        $region54: #{tpu_custom_call.1} parent=35 // pred_check_branch
          %2187 = sbr.rel (%p2185) target = $region56
        $region55: #{tpu_custom_call.1} parent=35 // pred_region
          %s2188 = smul.u32 32, %s29
          %s2189 = smul.u32 6, %s30
          %s2191 = ssub.s32 24576, 24576
          %2192 = vsyncadd %s2181, %s2191
          %s2193 = smul.addr %s2188, 6
          %s2194 = sadd.s32 %s2189, %s2193
          %s2195 = smul.addr %s28, 192
          %s2196 = sadd.s32 %s2194, %s2195
          %s2197 = smul.addr %s2196, 128
          %s2198 = scalar_lea.hbm %s4, %s2197
          %s2199 = sshll.u32 %s2184, 4
          %s2200 = int_to_ptr.vmem [resolvable:$true] %s2199
          %2205 = dma.vmem_to_hbm [thread:$0]  %s2200, 24576, %s2198, %s2181, 768, 768, 48
        $region56: #{tpu_custom_call.1} parent=35 // pred_fallthru
          _
      $region36: #{tpu_custom_call.1} parent=5 // pred_fallthru
        _
      %p2206 = scmp.le.s32.totalorder 2, %s18
      // Predicated region
      $region57: #{tpu_custom_call.1} parent=5 // pred_check
        %p2207 = pneg %p2206
      $region58: #{tpu_custom_call.1} parent=5 // pred_check_branch
        %2209 = sbr.rel (%p2207) target = $region60
      $region59: #{tpu_custom_call.1} parent=5 // pred_region
        %s2210 = ssub.s32 %s18, 2
        // Predicated region
        $region61: #{tpu_custom_call.1} parent=59 // pred_check
          %p2211 = pneg %p166
        $region62: #{tpu_custom_call.1} parent=59 // pred_check_branch
          %2213 = sbr.rel (%p2211) target = $region64
        $region63: #{tpu_custom_call.1} parent=59 // pred_region
          %s2214 = sand.u32 %s151, 1
          %s2215 = scalar_lea.sflag [#allocation4], %s2214
          %s2216 = sand.u32 %s151, 1
          %s2217 = smul.addr %s2216, 1536
          %s2218 = scalar_lea.vmem [#allocation10], %s2217
          %2219 = dma.done %s2215, 24576
        $region64: #{tpu_custom_call.1} parent=59 // pred_fallthru
          _
      $region60: #{tpu_custom_call.1} parent=5 // pred_fallthru
        _
    $region6: #{tpu_custom_call.1} parent=1 // loop_footer
      %s22 = sadd.s32 1, %s18
    $region7: #{tpu_custom_call.1} parent=1 // loop_footer_branch
      %17 = sbr.rel target = $region3
    $region8: #{tpu_custom_call.1} parent=1 // loop_exit
      _
    %2220 = vsyncpa [#allocation3], 1
    %s2221 = scalar_lea.sflag [#allocation3], 1
    %2222 = vsyncpa %s2221, 1
    %2223 = vsyncpa [#allocation6], 1
    %2224 = vsyncpa [#allocation9], 1
    %2225 = vsyncpa [#allocation4], 1
    %s2226 = scalar_lea.sflag [#allocation4], 1
    %2227 = vsyncpa %s2226, 1

</llo_original>
